<compile_context>
chip_gen: v5e
topology: v5e:2x2
jax: 0.10.0
libtpu: 0.0.40
codegen_flags: <defaults>
</compile_context>

<pallas_src>
import functools

import jax
import jax.numpy as jnp
from jax.experimental import pallas as pl
from jax.experimental.pallas import tpu as pltpu


def _layernorm(z, gamma, beta, eps=1e-5):
    # z: (N, E), gamma/beta: (1, E)
    mu = jnp.mean(z, axis=-1, keepdims=True)
    d = z - mu
    var = jnp.mean(d * d, axis=-1, keepdims=True)
    return d * jax.lax.rsqrt(var + eps) * gamma + beta


def encoder_block_kernel(
    x_ref,          # (Bb, T, E)   f32
    ln1_g_ref,      # (1, E)       f32
    ln1_b_ref,      # (1, E)       f32
    w_qkv_ref,      # (E, 3E)      bf16  (attention scale folded into the Q columns)
    wp_ref,         # (E, E)       bf16
    bp_ref,         # (1, E)       f32
    ln2_g_ref,      # (1, E)       f32
    ln2_b_ref,      # (1, E)       f32
    w1_ref,         # (E, 4E)      bf16
    b1_ref,         # (1, 4E)      f32
    w2_ref,         # (4E, E)      bf16
    b2_ref,         # (1, E)       f32
    out_ref,        # (Bb, T, 3E)  f32  fused [ y | k | v ]
    *, num_heads, tk_chunk,
):
    Bb, T, E = x_ref.shape
    hs = E // num_heads
    N = Bb * T

    x = x_ref[...].reshape(N, E)                                   # (N, E)

    # ---- LN1 ----
    xn = _layernorm(x, ln1_g_ref[...], ln1_b_ref[...])

    # ---- fused QKV projection (bf16 x bf16 -> f32 accumulation) ----
    qkv = jnp.dot(xn.astype(jnp.bfloat16), w_qkv_ref[...],
                  preferred_element_type=jnp.float32)              # (N, 3E)

    k_flat = qkv[:, E:2 * E]                                       # (N, E)
    v_flat = qkv[:, 2 * E:3 * E]                                   # (N, E)

    # k / v are kernel outputs: store them immediately (shortens their live ranges;
    # lane-aligned dense stores when E % 128 == 0).
    out_ref[:, :, E:2 * E] = k_flat.reshape(Bb, T, E)
    out_ref[:, :, 2 * E:3 * E] = v_flat.reshape(Bb, T, E)

    q_b = qkv[:, 0:E].reshape(Bb, T, E)                            # scale pre-folded
    k_b = k_flat.reshape(Bb, T, E)
    v_b = v_flat.reshape(Bb, T, E)

    wp = wp_ref[...]                                               # load once (bf16)

    def head_out(h):
        """One attention head, with key-axis chunking for large T."""
        lo = h * hs
        q_h = q_b[:, :, lo:lo + hs].astype(jnp.bfloat16)           # (Bb, T, hs)
        k_h = k_b[:, :, lo:lo + hs].astype(jnp.bfloat16)
        v_h = v_b[:, :, lo:lo + hs].astype(jnp.bfloat16)
        acc = None
        for c0 in range(0, T, tk_chunk):                           # static chunk loop
            c1 = min(c0 + tk_chunk, T)
            # scores: contraction over the head dim (no explicit k transpose)
            s = jnp.einsum('bqd,bkd->bqk', q_h, k_h[:, c0:c1, :],
                           preferred_element_type=jnp.float32)     # (Bb, Tq, tk)
            # F.softmax(wei, dim=1): normalize each *key column* over the query axis,
            # so key chunks are independent -- no online-softmax carry needed.
            m = jnp.max(s, axis=1, keepdims=True)
            e = jnp.exp(s - m)
            p = e * pl.reciprocal(jnp.sum(e, axis=1, keepdims=True), approx=True)
            o = jnp.einsum('bqk,bkd->bqd', p.astype(jnp.bfloat16), v_h[:, c0:c1, :],
                           preferred_element_type=jnp.float32)     # (Bb, T, hs)
            acc = o if acc is None else acc + o
        return acc

    # ---- multi-head self-attention + output projection (decoder=False, no mask) ----
    if hs % 128 == 0:
        # Lane-aligned heads: assemble the (N, E) bf16 attention output and run a
        # single K=E projection matmul (full MXU contraction depth, one weight push).
        attn = jnp.concatenate(
            [head_out(h).reshape(N, hs).astype(jnp.bfloat16) for h in range(num_heads)],
            axis=-1)                                               # (N, E) bf16
        proj = jnp.dot(attn, wp, preferred_element_type=jnp.float32)
    else:
        # Small / unaligned head_size: fold the projection into the head loop
        # (attn @ Wp == sum_h out_h @ Wp[h*hs:(h+1)*hs, :]) instead of paying an
        # unaligned lane concat.
        proj = jnp.zeros((N, E), jnp.float32)
        for h in range(num_heads):                                 # static unroll
            lo = h * hs
            proj = proj + jnp.dot(head_out(h).reshape(N, hs).astype(jnp.bfloat16),
                                  wp[lo:lo + hs, :],
                                  preferred_element_type=jnp.float32)

    x1 = x + proj + bp_ref[...]                                    # residual 1

    # ---- LN2 + FeedForward ----
    xn2 = _layernorm(x1, ln2_g_ref[...], ln2_b_ref[...])
    hdn = jnp.dot(xn2.astype(jnp.bfloat16), w1_ref[...],
                  preferred_element_type=jnp.float32) + b1_ref[...]
    hdn = jnp.where(hdn > 0, hdn, 0.01 * hdn)                      # LeakyReLU(0.01)
    ff = jnp.dot(hdn.astype(jnp.bfloat16), w2_ref[...],
                 preferred_element_type=jnp.float32) + b2_ref[...]

    # ---- residual 2 + lane-slice store of y ----
    out_ref[:, :, 0:E] = (x1 + ff).reshape(Bb, T, E)


# ---------------------------------------------------------------------------
# Wrapper-side resource planning
# ---------------------------------------------------------------------------

def _tpu_vmem_and_cores():
    """(per-TensorCore VMEM bytes, #TensorCores sharing the grid). Conservative defaults."""
    vmem_cap = 64 * 1024 * 1024          # conservative default (v7x per-TC)
    num_tc = 2                           # conservative: keep the grid splittable
    kind = ""
    try:
        kind = jax.devices()[0].device_kind.lower()
    except Exception:
        pass
    if any(t in kind for t in ("v5 lite", "v5e", "v5litepod", "v6 lite", "v6e", "v6")):
        vmem_cap, num_tc = 128 * 1024 * 1024, 1      # single-TC chips
    elif any(t in kind for t in ("v4", "v5p")):
        vmem_cap, num_tc = 128 * 1024 * 1024, 2      # megacore
    try:
        vmem_cap = int(pltpu.get_tpu_info().vmem_capacity_bytes)
    except Exception:
        pass
    return vmem_cap, num_tc


def _bytes_per_row(T, E, hs, tk_chunk):
    """Rough per-row (per token) VMEM cost of one grid step."""
    io = (2 * E + 2 * 3 * E) * 4          # double-buffered x input + fused [y|k|v] output
    inter = 14 * E * 4                    # f32 intermediates: x, xn, qkv(3E), proj, x1, xn2, hdn(4E), ff
    attn = (3 * tk_chunk + 2 * hs) * 4    # per-head score/exp/prob chunk + head output
    return io + inter + attn


def _pick_block_b(B, T, max_rows, num_tc):
    """Largest divisor of B whose (block_b, T) slab fits the VMEM row budget, while
    keeping >= num_tc (balanced, if possible) grid steps on multi-TC chips."""
    max_bb = max(max_rows // T, 1)
    divisors = [d for d in range(1, B + 1) if B % d == 0]
    for require_multi, require_balanced in ((True, True), (True, False), (False, False)):
        cands = []
        for d in divisors:
            if d > max_bb:
                continue
            g = B // d
            if require_multi and g < num_tc:
                continue
            if require_balanced and num_tc > 1 and g % num_tc != 0:
                continue
            cands.append(d)
        if cands:
            return max(cands)
    return 1


def _weight_spec(a, use_buffered_1):
    nd = a.ndim
    idx = lambda b, _nd=nd: (0,) * _nd
    if use_buffered_1 and hasattr(pl, "Buffered"):
        # Grid-invariant weights: single VMEM buffer (no double-buffering).
        return pl.BlockSpec(a.shape, idx, pipeline_mode=pl.Buffered(1))
    return pl.BlockSpec(a.shape, idx)


def prepare_encoder_weights(params, num_heads):
    """One-time (per layer) weight prep: fuse QKV, fold the attention scale, cast bf16.
    Hoisted out of encoder_block so per-call HBM traffic is just x + the kernel."""
    E = params["wp"].shape[0]
    scale = float(E) ** -0.5                                     # C ** -0.5, C = n_embed
    wq = jnp.moveaxis(params["wq"], 0, 1).reshape(E, E) * scale  # scale folded into Q
    wk = jnp.moveaxis(params["wk"], 0, 1).reshape(E, E)
    wv = jnp.moveaxis(params["wv"], 0, 1).reshape(E, E)
    w_qkv = jnp.concatenate([wq, wk, wv], axis=-1).astype(jnp.bfloat16)
    return dict(
        ln1_g=params["ln1_g"], ln1_b=params["ln1_b"],
        w_qkv=w_qkv,
        wp=params["wp"].astype(jnp.bfloat16), bp=params["bp"],
        ln2_g=params["ln2_g"], ln2_b=params["ln2_b"],
        w1=params["w1"].astype(jnp.bfloat16), b1=params["b1"],
        w2=params["w2"].astype(jnp.bfloat16), b2=params["b2"],
    )


def encoder_block_prepared(x, prep, num_heads):
    """x: (B, T, E) float32, prep: output of prepare_encoder_weights.
    Returns (y, k, v), each (B, T, E) float32."""
    B, T, E = x.shape
    hs = E // num_heads
    assert hs * num_heads == E

    vmem_cap, num_tc = _tpu_vmem_and_cores()
    # Generation-aware scoped VMEM limit: ~48 MiB on 64-MiB-VMEM chips (v7x),
    # ~100 MiB on 128-MiB chips (v5e/v6e/v4/v5p).  Always leave compiler headroom.
    vmem_limit = 48 * 1024 * 1024 if vmem_cap <= 64 * 1024 * 1024 else 100 * 1024 * 1024

    tk_chunk = T if T <= 512 else 512    # bound (Bb, T, T) f32 attention temporaries

    weight_bytes = sum(int(a.size) * a.dtype.itemsize for a in prep.values())
    budget = vmem_limit - weight_bytes - 6 * 1024 * 1024          # compiler scratch headroom
    per_row = _bytes_per_row(T, E, hs, tk_chunk)
    max_rows = max(budget // per_row, T)                          # always allow >= 1 batch row
    block_b = _pick_block_b(B, T, max_rows, num_tc)
    grid = (B // block_b,)

    args = (
        x,
        prep["ln1_g"], prep["ln1_b"],
        prep["w_qkv"], prep["wp"], prep["bp"],
        prep["ln2_g"], prep["ln2_b"],
        prep["w1"], prep["b1"], prep["w2"], prep["b2"],
    )

    def build(use_buffered_1):
        x_spec = pl.BlockSpec((block_b, T, E), lambda b: (b, 0, 0))
        in_specs = [x_spec] + [_weight_spec(a, use_buffered_1) for a in args[1:]]
        out_spec = pl.BlockSpec((block_b, T, 3 * E), lambda b: (b, 0, 0))
        return pl.pallas_call(
            functools.partial(encoder_block_kernel,
                              num_heads=num_heads, tk_chunk=tk_chunk),
            grid=grid,
            in_specs=in_specs,
            out_specs=out_spec,
            out_shape=jax.ShapeDtypeStruct((B, T, 3 * E), jnp.float32),
            compiler_params=pltpu.CompilerParams(
                dimension_semantics=("parallel",),
                vmem_limit_bytes=vmem_limit,
            ),
        )

    try:
        fused = build(True)(*args)
    except Exception:
        # TODO(synk): fallback for jax versions without BlockSpec(pipeline_mode=...).
        fused = build(False)(*args)

    y = fused[..., :E]
    k = fused[..., E:2 * E]
    v = fused[..., 2 * E:3 * E]
    return y, k, v


def encoder_block(x, params, num_heads):
    """Convenience wrapper: prep weights (should be hoisted by callers) + run kernel."""
    return encoder_block_prepared(x, prepare_encoder_weights(params, num_heads), num_heads)


# ---------------------------------------------------------------------------
# Pure-JAX f32 reference (mirrors the PyTorch module, eval mode)
# ---------------------------------------------------------------------------

def reference_encoder_block(x, params):
    E = x.shape[-1]
    H = params["wq"].shape[0]
    scale = float(E) ** -0.5

    def ln(z, g, b):
        mu = jnp.mean(z, axis=-1, keepdims=True)
        var = jnp.mean((z - mu) ** 2, axis=-1, keepdims=True)
        return (z - mu) / jnp.sqrt(var + 1e-5) * g + b

    xn = ln(x, params["ln1_g"], params["ln1_b"])
    outs, ks, vs = [], [], []
    for h in range(H):
        q = xn @ params["wq"][h]
        k = xn @ params["wk"][h]
        v = xn @ params["wv"][h]
        wei = jnp.einsum("bqd,bkd->bqk", q, k) * scale
        wei = jax.nn.softmax(wei, axis=1)          # dim=1, as in the reference
        outs.append(jnp.einsum("bqk,bkd->bqd", wei, v))
        ks.append(k)
        vs.append(v)
    attn = jnp.concatenate(outs, axis=-1)
    k_cat = jnp.concatenate(ks, axis=-1)
    v_cat = jnp.concatenate(vs, axis=-1)
    x1 = x + (attn @ params["wp"] + params["bp"])
    xn2 = ln(x1, params["ln2_g"], params["ln2_b"])
    h1 = xn2 @ params["w1"] + params["b1"]
    h1 = jnp.where(h1 > 0, h1, 0.01 * h1)
    x2 = x1 + (h1 @ params["w2"] + params["b2"])
    return x2, k_cat, v_cat


if __name__ == "__main__":
    B, T, n_embed, num_heads = 2, 8, 32, 4
    head_size = n_embed // num_heads

    key = jax.random.PRNGKey(0)
    keys = jax.random.split(key, 12)

    params = {
        "ln1_g": jnp.ones((1, n_embed), jnp.float32),
        "ln1_b": jnp.zeros((1, n_embed), jnp.float32),
        "wq": 0.05 * jax.random.normal(keys[0], (num_heads, n_embed, head_size), jnp.float32),
        "wk": 0.05 * jax.random.normal(keys[1], (num_heads, n_embed, head_size), jnp.float32),
        "wv": 0.05 * jax.random.normal(keys[2], (num_heads, n_embed, head_size), jnp.float32),
        "wp": 0.05 * jax.random.normal(keys[3], (n_embed, n_embed), jnp.float32),
        "bp": 0.01 * jax.random.normal(keys[4], (1, n_embed), jnp.float32),
        "ln2_g": jnp.ones((1, n_embed), jnp.float32),
        "ln2_b": jnp.zeros((1, n_embed), jnp.float32),
        "w1": 0.05 * jax.random.normal(keys[5], (n_embed, 4 * n_embed), jnp.float32),
        "b1": 0.01 * jax.random.normal(keys[6], (1, 4 * n_embed), jnp.float32),
        "w2": 0.05 * jax.random.normal(keys[7], (4 * n_embed, n_embed), jnp.float32),
        "b2": 0.01 * jax.random.normal(keys[8], (1, n_embed), jnp.float32),
    }

    x = jax.random.normal(keys[9], (B, T, n_embed), jnp.float32)

    # Weight prep hoisted (paid once per layer, not per call).
    prep = prepare_encoder_weights(params, num_heads)
    y, k, v = encoder_block_prepared(x, prep, num_heads)
    jax.block_until_ready((y, k, v))

    y_ref, k_ref, v_ref = reference_encoder_block(x, params)
    assert jnp.allclose(y, y_ref, atol=1e-2, rtol=1e-2), "y mismatch"
    assert jnp.allclose(k, k_ref, atol=1e-2, rtol=1e-2), "k mismatch"
    assert jnp.allclose(v, v_ref, atol=1e-2, rtol=1e-2), "v mismatch"

    print("KERNEL_OK")
</pallas_src>

<mosaic_0001>
module attributes {stable_mosaic.version = 11 : i64} {
  func.func @encoder_block_kernel(%arg0: i32, %arg1: memref<1x8x32xf32, #tpu.memory_space<vmem>>, %arg2: memref<1x32xf32, #tpu.memory_space<vmem>>, %arg3: memref<1x32xf32, #tpu.memory_space<vmem>>, %arg4: memref<32x96xbf16, #tpu.memory_space<vmem>>, %arg5: memref<32x32xbf16, #tpu.memory_space<vmem>>, %arg6: memref<1x32xf32, #tpu.memory_space<vmem>>, %arg7: memref<1x32xf32, #tpu.memory_space<vmem>>, %arg8: memref<1x32xf32, #tpu.memory_space<vmem>>, %arg9: memref<32x128xbf16, #tpu.memory_space<vmem>>, %arg10: memref<1x128xf32, #tpu.memory_space<vmem>>, %arg11: memref<128x32xbf16, #tpu.memory_space<vmem>>, %arg12: memref<1x32xf32, #tpu.memory_space<vmem>>, %arg13: memref<1x8x96xf32, #tpu.memory_space<vmem>>) attributes {dimension_semantics = [#tpu.dimension_semantics<parallel>], iteration_bounds = array<i64: 2>, scalar_prefetch = 0 : i64, scratch_operands = 0 : i64, tpu.core_type = #tpu.core_type<tc>, window_params = [{transform_indices = @transform_0, window_bounds = array<i64: 1, 8, 32>}, {pipeline_mode = #tpu.pipeline_mode<synchronous>, transform_indices = @transform_1, window_bounds = array<i64: 1, 32>}, {pipeline_mode = #tpu.pipeline_mode<synchronous>, transform_indices = @transform_2, window_bounds = array<i64: 1, 32>}, {pipeline_mode = #tpu.pipeline_mode<synchronous>, transform_indices = @transform_3, window_bounds = array<i64: 32, 96>}, {pipeline_mode = #tpu.pipeline_mode<synchronous>, transform_indices = @transform_4, window_bounds = array<i64: 32, 32>}, {pipeline_mode = #tpu.pipeline_mode<synchronous>, transform_indices = @transform_5, window_bounds = array<i64: 1, 32>}, {pipeline_mode = #tpu.pipeline_mode<synchronous>, transform_indices = @transform_6, window_bounds = array<i64: 1, 32>}, {pipeline_mode = #tpu.pipeline_mode<synchronous>, transform_indices = @transform_7, window_bounds = array<i64: 1, 32>}, {pipeline_mode = #tpu.pipeline_mode<synchronous>, transform_indices = @transform_8, window_bounds = array<i64: 32, 128>}, {pipeline_mode = #tpu.pipeline_mode<synchronous>, transform_indices = @transform_9, window_bounds = array<i64: 1, 128>}, {pipeline_mode = #tpu.pipeline_mode<synchronous>, transform_indices = @transform_10, window_bounds = array<i64: 128, 32>}, {pipeline_mode = #tpu.pipeline_mode<synchronous>, transform_indices = @transform_11, window_bounds = array<i64: 1, 32>}, {transform_indices = @transform_12, window_bounds = array<i64: 1, 8, 96>}]} {
    %c0 = arith.constant 0 : index
    %c0_0 = arith.constant 0 : index
    %c0_1 = arith.constant 0 : index
    %0 = vector.load %arg1[%c0, %c0_0, %c0_1] : memref<1x8x32xf32, #tpu.memory_space<vmem>>, vector<1x8x32xf32>
    %1 = vector.shape_cast %0 : vector<1x8x32xf32> to vector<8x32xf32>
    %c0_2 = arith.constant 0 : index
    %c0_3 = arith.constant 0 : index
    %2 = vector.load %arg2[%c0_2, %c0_3] : memref<1x32xf32, #tpu.memory_space<vmem>>, vector<1x32xf32>
    %c0_4 = arith.constant 0 : index
    %c0_5 = arith.constant 0 : index
    %3 = vector.load %arg3[%c0_4, %c0_5] : memref<1x32xf32, #tpu.memory_space<vmem>>, vector<1x32xf32>
    %cst = arith.constant dense<0.000000e+00> : vector<8xf32>
    %4 = vector.multi_reduction <add>, %1, %cst [1] : vector<8x32xf32> to vector<8xf32>
    %5 = vector.shape_cast %4 : vector<8xf32> to vector<8x1xf32>
    %cst_6 = arith.constant 3.200000e+01 : f32
    %6 = vector.broadcast %cst_6 : f32 to vector<8x1xf32>
    %7 = arith.divf %5, %6 : vector<8x1xf32>
    %8 = vector.broadcast %7 : vector<8x1xf32> to vector<8x32xf32>
    %9 = arith.subf %1, %8 : vector<8x32xf32>
    %10 = arith.mulf %9, %9 : vector<8x32xf32>
    %cst_7 = arith.constant dense<0.000000e+00> : vector<8xf32>
    %11 = vector.multi_reduction <add>, %10, %cst_7 [1] : vector<8x32xf32> to vector<8xf32>
    %12 = vector.shape_cast %11 : vector<8xf32> to vector<8x1xf32>
    %cst_8 = arith.constant 3.200000e+01 : f32
    %13 = vector.broadcast %cst_8 : f32 to vector<8x1xf32>
    %14 = arith.divf %12, %13 : vector<8x1xf32>
    %cst_9 = arith.constant 9.99999974E-6 : f32
    %15 = vector.broadcast %cst_9 : f32 to vector<8x1xf32>
    %16 = arith.addf %14, %15 : vector<8x1xf32>
    %17 = math.rsqrt %16 : vector<8x1xf32>
    %18 = vector.broadcast %17 : vector<8x1xf32> to vector<8x32xf32>
    %19 = arith.mulf %9, %18 : vector<8x32xf32>
    %20 = vector.broadcast %2 : vector<1x32xf32> to vector<8x32xf32>
    %21 = arith.mulf %19, %20 : vector<8x32xf32>
    %22 = vector.broadcast %3 : vector<1x32xf32> to vector<8x32xf32>
    %23 = arith.addf %21, %22 : vector<8x32xf32>
    %24 = arith.truncf %23 : vector<8x32xf32> to vector<8x32xbf16>
    %c0_10 = arith.constant 0 : index
    %c0_11 = arith.constant 0 : index
    %25 = vector.load %arg4[%c0_10, %c0_11] : memref<32x96xbf16, #tpu.memory_space<vmem>>, vector<32x96xbf16>
    %cst_12 = arith.constant dense<0.000000e+00> : vector<8x96xf32>
    %26 = tpu.matmul %24, %25, %cst_12 {dimension_numbers = #tpu.dot_dimension_numbers<[1], [0], [0], [1], [0, 0, 1, 1], [], []>} : vector<8x32xbf16>, vector<32x96xbf16>, vector<8x96xf32> -> vector<8x96xf32>
    %27 = vector.extract_strided_slice %26 {offsets = [0, 32], sizes = [8, 32], strides = [1, 1]} : vector<8x96xf32> to vector<8x32xf32>
    %28 = vector.extract_strided_slice %26 {offsets = [0, 64], sizes = [8, 32], strides = [1, 1]} : vector<8x96xf32> to vector<8x32xf32>
    %29 = vector.shape_cast %27 : vector<8x32xf32> to vector<1x8x32xf32>
    %c0_13 = arith.constant 0 : index
    %c0_14 = arith.constant 0 : index
    %c32 = arith.constant 32 : index
    %30 = vector.load %arg13[%c0_13, %c0_14, %c32] : memref<1x8x96xf32, #tpu.memory_space<vmem>>, vector<1x8x32xf32>
    tpu.vector_store %arg13[%c0_13, %c0_14, %c32], %29 {strides = array<i32>} : memref<1x8x96xf32, #tpu.memory_space<vmem>>, vector<1x8x32xf32>,
    %31 = vector.shape_cast %28 : vector<8x32xf32> to vector<1x8x32xf32>
    %c0_15 = arith.constant 0 : index
    %c0_16 = arith.constant 0 : index
    %c64 = arith.constant 64 : index
    %32 = vector.load %arg13[%c0_15, %c0_16, %c64] : memref<1x8x96xf32, #tpu.memory_space<vmem>>, vector<1x8x32xf32>
    tpu.vector_store %arg13[%c0_15, %c0_16, %c64], %31 {strides = array<i32>} : memref<1x8x96xf32, #tpu.memory_space<vmem>>, vector<1x8x32xf32>,
    %33 = vector.extract_strided_slice %26 {offsets = [0, 0], sizes = [8, 32], strides = [1, 1]} : vector<8x96xf32> to vector<8x32xf32>
    %34 = vector.shape_cast %33 : vector<8x32xf32> to vector<1x8x32xf32>
    %35 = vector.shape_cast %27 : vector<8x32xf32> to vector<1x8x32xf32>
    %36 = vector.shape_cast %28 : vector<8x32xf32> to vector<1x8x32xf32>
    %c0_17 = arith.constant 0 : index
    %c0_18 = arith.constant 0 : index
    %37 = vector.load %arg5[%c0_17, %c0_18] : memref<32x32xbf16, #tpu.memory_space<vmem>>, vector<32x32xbf16>
    %cst_19 = arith.constant 0.000000e+00 : f32
    %38 = vector.broadcast %cst_19 : f32 to vector<8x32xf32>
    %39 = vector.extract_strided_slice %34 {offsets = [0, 0, 0], sizes = [1, 8, 8], strides = [1, 1, 1]} : vector<1x8x32xf32> to vector<1x8x8xf32>
    %40 = arith.truncf %39 : vector<1x8x8xf32> to vector<1x8x8xbf16>
    %41 = vector.extract_strided_slice %35 {offsets = [0, 0, 0], sizes = [1, 8, 8], strides = [1, 1, 1]} : vector<1x8x32xf32> to vector<1x8x8xf32>
    %42 = arith.truncf %41 : vector<1x8x8xf32> to vector<1x8x8xbf16>
    %43 = vector.extract_strided_slice %36 {offsets = [0, 0, 0], sizes = [1, 8, 8], strides = [1, 1, 1]} : vector<1x8x32xf32> to vector<1x8x8xf32>
    %44 = arith.truncf %43 : vector<1x8x8xf32> to vector<1x8x8xbf16>
    "tpu.trace_start"() <{level = 10 : i32, message = "bqd,bkd->bqk"}> : () -> ()
    %cst_20 = arith.constant dense<0.000000e+00> : vector<1x8x8xf32>
    %45 = tpu.matmul %40, %42, %cst_20 {dimension_numbers = #tpu.dot_dimension_numbers<[2], [2], [1], [1], [0, 0, 0, 1, 1, 1], [0], [0]>} : vector<1x8x8xbf16>, vector<1x8x8xbf16>, vector<1x8x8xf32> -> vector<1x8x8xf32>
    "tpu.trace_stop"() : () -> ()
    %cst_21 = arith.constant dense<0xFF800000> : vector<1x8xf32>
    %46 = vector.multi_reduction <maximumf>, %45, %cst_21 [1] : vector<1x8x8xf32> to vector<1x8xf32>
    %47 = vector.shape_cast %46 : vector<1x8xf32> to vector<1x1x8xf32>
    %48 = vector.broadcast %47 : vector<1x1x8xf32> to vector<1x8x8xf32>
    %49 = arith.subf %45, %48 : vector<1x8x8xf32>
    %50 = math.exp %49 : vector<1x8x8xf32>
    %cst_22 = arith.constant dense<0.000000e+00> : vector<1x8xf32>
    %51 = vector.multi_reduction <add>, %50, %cst_22 [1] : vector<1x8x8xf32> to vector<1x8xf32>
    %52 = vector.shape_cast %51 : vector<1x8xf32> to vector<1x1x8xf32>
    %53 = tpu.reciprocal %52 {approx = true} : vector<1x1x8xf32> -> vector<1x1x8xf32>
    %54 = vector.broadcast %53 : vector<1x1x8xf32> to vector<1x8x8xf32>
    %55 = arith.mulf %50, %54 : vector<1x8x8xf32>
    %56 = arith.truncf %55 : vector<1x8x8xf32> to vector<1x8x8xbf16>
    "tpu.trace_start"() <{level = 10 : i32, message = "bqk,bkd->bqd"}> : () -> ()
    %cst_23 = arith.constant dense<0.000000e+00> : vector<1x8x8xf32>
    %57 = tpu.matmul %56, %44, %cst_23 {dimension_numbers = #tpu.dot_dimension_numbers<[2], [1], [1], [2], [0, 0, 0, 1, 1, 2], [0], [0]>} : vector<1x8x8xbf16>, vector<1x8x8xbf16>, vector<1x8x8xf32> -> vector<1x8x8xf32>
    "tpu.trace_stop"() : () -> ()
    %58 = vector.shape_cast %57 : vector<1x8x8xf32> to vector<8x8xf32>
    %59 = arith.truncf %58 : vector<8x8xf32> to vector<8x8xbf16>
    %60 = vector.extract_strided_slice %37 {offsets = [0, 0], sizes = [8, 32], strides = [1, 1]} : vector<32x32xbf16> to vector<8x32xbf16>
    %cst_24 = arith.constant dense<0.000000e+00> : vector<8x32xf32>
    %61 = tpu.matmul %59, %60, %cst_24 {dimension_numbers = #tpu.dot_dimension_numbers<[1], [0], [0], [1], [0, 0, 1, 1], [], []>} : vector<8x8xbf16>, vector<8x32xbf16>, vector<8x32xf32> -> vector<8x32xf32>
    %62 = arith.addf %38, %61 : vector<8x32xf32>
    %63 = vector.extract_strided_slice %34 {offsets = [0, 0, 8], sizes = [1, 8, 8], strides = [1, 1, 1]} : vector<1x8x32xf32> to vector<1x8x8xf32>
    %64 = arith.truncf %63 : vector<1x8x8xf32> to vector<1x8x8xbf16>
    %65 = vector.extract_strided_slice %35 {offsets = [0, 0, 8], sizes = [1, 8, 8], strides = [1, 1, 1]} : vector<1x8x32xf32> to vector<1x8x8xf32>
    %66 = arith.truncf %65 : vector<1x8x8xf32> to vector<1x8x8xbf16>
    %67 = vector.extract_strided_slice %36 {offsets = [0, 0, 8], sizes = [1, 8, 8], strides = [1, 1, 1]} : vector<1x8x32xf32> to vector<1x8x8xf32>
    %68 = arith.truncf %67 : vector<1x8x8xf32> to vector<1x8x8xbf16>
    "tpu.trace_start"() <{level = 10 : i32, message = "bqd,bkd->bqk"}> : () -> ()
    %cst_25 = arith.constant dense<0.000000e+00> : vector<1x8x8xf32>
    %69 = tpu.matmul %64, %66, %cst_25 {dimension_numbers = #tpu.dot_dimension_numbers<[2], [2], [1], [1], [0, 0, 0, 1, 1, 1], [0], [0]>} : vector<1x8x8xbf16>, vector<1x8x8xbf16>, vector<1x8x8xf32> -> vector<1x8x8xf32>
    "tpu.trace_stop"() : () -> ()
    %cst_26 = arith.constant dense<0xFF800000> : vector<1x8xf32>
    %70 = vector.multi_reduction <maximumf>, %69, %cst_26 [1] : vector<1x8x8xf32> to vector<1x8xf32>
    %71 = vector.shape_cast %70 : vector<1x8xf32> to vector<1x1x8xf32>
    %72 = vector.broadcast %71 : vector<1x1x8xf32> to vector<1x8x8xf32>
    %73 = arith.subf %69, %72 : vector<1x8x8xf32>
    %74 = math.exp %73 : vector<1x8x8xf32>
    %cst_27 = arith.constant dense<0.000000e+00> : vector<1x8xf32>
    %75 = vector.multi_reduction <add>, %74, %cst_27 [1] : vector<1x8x8xf32> to vector<1x8xf32>
    %76 = vector.shape_cast %75 : vector<1x8xf32> to vector<1x1x8xf32>
    %77 = tpu.reciprocal %76 {approx = true} : vector<1x1x8xf32> -> vector<1x1x8xf32>
    %78 = vector.broadcast %77 : vector<1x1x8xf32> to vector<1x8x8xf32>
    %79 = arith.mulf %74, %78 : vector<1x8x8xf32>
    %80 = arith.truncf %79 : vector<1x8x8xf32> to vector<1x8x8xbf16>
    "tpu.trace_start"() <{level = 10 : i32, message = "bqk,bkd->bqd"}> : () -> ()
    %cst_28 = arith.constant dense<0.000000e+00> : vector<1x8x8xf32>
    %81 = tpu.matmul %80, %68, %cst_28 {dimension_numbers = #tpu.dot_dimension_numbers<[2], [1], [1], [2], [0, 0, 0, 1, 1, 2], [0], [0]>} : vector<1x8x8xbf16>, vector<1x8x8xbf16>, vector<1x8x8xf32> -> vector<1x8x8xf32>
    "tpu.trace_stop"() : () -> ()
    %82 = vector.shape_cast %81 : vector<1x8x8xf32> to vector<8x8xf32>
    %83 = arith.truncf %82 : vector<8x8xf32> to vector<8x8xbf16>
    %84 = vector.extract_strided_slice %37 {offsets = [8, 0], sizes = [8, 32], strides = [1, 1]} : vector<32x32xbf16> to vector<8x32xbf16>
    %cst_29 = arith.constant dense<0.000000e+00> : vector<8x32xf32>
    %85 = tpu.matmul %83, %84, %cst_29 {dimension_numbers = #tpu.dot_dimension_numbers<[1], [0], [0], [1], [0, 0, 1, 1], [], []>} : vector<8x8xbf16>, vector<8x32xbf16>, vector<8x32xf32> -> vector<8x32xf32>
    %86 = arith.addf %62, %85 : vector<8x32xf32>
    %87 = vector.extract_strided_slice %34 {offsets = [0, 0, 16], sizes = [1, 8, 8], strides = [1, 1, 1]} : vector<1x8x32xf32> to vector<1x8x8xf32>
    %88 = arith.truncf %87 : vector<1x8x8xf32> to vector<1x8x8xbf16>
    %89 = vector.extract_strided_slice %35 {offsets = [0, 0, 16], sizes = [1, 8, 8], strides = [1, 1, 1]} : vector<1x8x32xf32> to vector<1x8x8xf32>
    %90 = arith.truncf %89 : vector<1x8x8xf32> to vector<1x8x8xbf16>
    %91 = vector.extract_strided_slice %36 {offsets = [0, 0, 16], sizes = [1, 8, 8], strides = [1, 1, 1]} : vector<1x8x32xf32> to vector<1x8x8xf32>
    %92 = arith.truncf %91 : vector<1x8x8xf32> to vector<1x8x8xbf16>
    "tpu.trace_start"() <{level = 10 : i32, message = "bqd,bkd->bqk"}> : () -> ()
    %cst_30 = arith.constant dense<0.000000e+00> : vector<1x8x8xf32>
    %93 = tpu.matmul %88, %90, %cst_30 {dimension_numbers = #tpu.dot_dimension_numbers<[2], [2], [1], [1], [0, 0, 0, 1, 1, 1], [0], [0]>} : vector<1x8x8xbf16>, vector<1x8x8xbf16>, vector<1x8x8xf32> -> vector<1x8x8xf32>
    "tpu.trace_stop"() : () -> ()
    %cst_31 = arith.constant dense<0xFF800000> : vector<1x8xf32>
    %94 = vector.multi_reduction <maximumf>, %93, %cst_31 [1] : vector<1x8x8xf32> to vector<1x8xf32>
    %95 = vector.shape_cast %94 : vector<1x8xf32> to vector<1x1x8xf32>
    %96 = vector.broadcast %95 : vector<1x1x8xf32> to vector<1x8x8xf32>
    %97 = arith.subf %93, %96 : vector<1x8x8xf32>
    %98 = math.exp %97 : vector<1x8x8xf32>
    %cst_32 = arith.constant dense<0.000000e+00> : vector<1x8xf32>
    %99 = vector.multi_reduction <add>, %98, %cst_32 [1] : vector<1x8x8xf32> to vector<1x8xf32>
    %100 = vector.shape_cast %99 : vector<1x8xf32> to vector<1x1x8xf32>
    %101 = tpu.reciprocal %100 {approx = true} : vector<1x1x8xf32> -> vector<1x1x8xf32>
    %102 = vector.broadcast %101 : vector<1x1x8xf32> to vector<1x8x8xf32>
    %103 = arith.mulf %98, %102 : vector<1x8x8xf32>
    %104 = arith.truncf %103 : vector<1x8x8xf32> to vector<1x8x8xbf16>
    "tpu.trace_start"() <{level = 10 : i32, message = "bqk,bkd->bqd"}> : () -> ()
    %cst_33 = arith.constant dense<0.000000e+00> : vector<1x8x8xf32>
    %105 = tpu.matmul %104, %92, %cst_33 {dimension_numbers = #tpu.dot_dimension_numbers<[2], [1], [1], [2], [0, 0, 0, 1, 1, 2], [0], [0]>} : vector<1x8x8xbf16>, vector<1x8x8xbf16>, vector<1x8x8xf32> -> vector<1x8x8xf32>
    "tpu.trace_stop"() : () -> ()
    %106 = vector.shape_cast %105 : vector<1x8x8xf32> to vector<8x8xf32>
    %107 = arith.truncf %106 : vector<8x8xf32> to vector<8x8xbf16>
    %108 = vector.extract_strided_slice %37 {offsets = [16, 0], sizes = [8, 32], strides = [1, 1]} : vector<32x32xbf16> to vector<8x32xbf16>
    %cst_34 = arith.constant dense<0.000000e+00> : vector<8x32xf32>
    %109 = tpu.matmul %107, %108, %cst_34 {dimension_numbers = #tpu.dot_dimension_numbers<[1], [0], [0], [1], [0, 0, 1, 1], [], []>} : vector<8x8xbf16>, vector<8x32xbf16>, vector<8x32xf32> -> vector<8x32xf32>
    %110 = arith.addf %86, %109 : vector<8x32xf32>
    %111 = vector.extract_strided_slice %34 {offsets = [0, 0, 24], sizes = [1, 8, 8], strides = [1, 1, 1]} : vector<1x8x32xf32> to vector<1x8x8xf32>
    %112 = arith.truncf %111 : vector<1x8x8xf32> to vector<1x8x8xbf16>
    %113 = vector.extract_strided_slice %35 {offsets = [0, 0, 24], sizes = [1, 8, 8], strides = [1, 1, 1]} : vector<1x8x32xf32> to vector<1x8x8xf32>
    %114 = arith.truncf %113 : vector<1x8x8xf32> to vector<1x8x8xbf16>
    %115 = vector.extract_strided_slice %36 {offsets = [0, 0, 24], sizes = [1, 8, 8], strides = [1, 1, 1]} : vector<1x8x32xf32> to vector<1x8x8xf32>
    %116 = arith.truncf %115 : vector<1x8x8xf32> to vector<1x8x8xbf16>
    "tpu.trace_start"() <{level = 10 : i32, message = "bqd,bkd->bqk"}> : () -> ()
    %cst_35 = arith.constant dense<0.000000e+00> : vector<1x8x8xf32>
    %117 = tpu.matmul %112, %114, %cst_35 {dimension_numbers = #tpu.dot_dimension_numbers<[2], [2], [1], [1], [0, 0, 0, 1, 1, 1], [0], [0]>} : vector<1x8x8xbf16>, vector<1x8x8xbf16>, vector<1x8x8xf32> -> vector<1x8x8xf32>
    "tpu.trace_stop"() : () -> ()
    %cst_36 = arith.constant dense<0xFF800000> : vector<1x8xf32>
    %118 = vector.multi_reduction <maximumf>, %117, %cst_36 [1] : vector<1x8x8xf32> to vector<1x8xf32>
    %119 = vector.shape_cast %118 : vector<1x8xf32> to vector<1x1x8xf32>
    %120 = vector.broadcast %119 : vector<1x1x8xf32> to vector<1x8x8xf32>
    %121 = arith.subf %117, %120 : vector<1x8x8xf32>
    %122 = math.exp %121 : vector<1x8x8xf32>
    %cst_37 = arith.constant dense<0.000000e+00> : vector<1x8xf32>
    %123 = vector.multi_reduction <add>, %122, %cst_37 [1] : vector<1x8x8xf32> to vector<1x8xf32>
    %124 = vector.shape_cast %123 : vector<1x8xf32> to vector<1x1x8xf32>
    %125 = tpu.reciprocal %124 {approx = true} : vector<1x1x8xf32> -> vector<1x1x8xf32>
    %126 = vector.broadcast %125 : vector<1x1x8xf32> to vector<1x8x8xf32>
    %127 = arith.mulf %122, %126 : vector<1x8x8xf32>
    %128 = arith.truncf %127 : vector<1x8x8xf32> to vector<1x8x8xbf16>
    "tpu.trace_start"() <{level = 10 : i32, message = "bqk,bkd->bqd"}> : () -> ()
    %cst_38 = arith.constant dense<0.000000e+00> : vector<1x8x8xf32>
    %129 = tpu.matmul %128, %116, %cst_38 {dimension_numbers = #tpu.dot_dimension_numbers<[2], [1], [1], [2], [0, 0, 0, 1, 1, 2], [0], [0]>} : vector<1x8x8xbf16>, vector<1x8x8xbf16>, vector<1x8x8xf32> -> vector<1x8x8xf32>
    "tpu.trace_stop"() : () -> ()
    %130 = vector.shape_cast %129 : vector<1x8x8xf32> to vector<8x8xf32>
    %131 = arith.truncf %130 : vector<8x8xf32> to vector<8x8xbf16>
    %132 = vector.extract_strided_slice %37 {offsets = [24, 0], sizes = [8, 32], strides = [1, 1]} : vector<32x32xbf16> to vector<8x32xbf16>
    %cst_39 = arith.constant dense<0.000000e+00> : vector<8x32xf32>
    %133 = tpu.matmul %131, %132, %cst_39 {dimension_numbers = #tpu.dot_dimension_numbers<[1], [0], [0], [1], [0, 0, 1, 1], [], []>} : vector<8x8xbf16>, vector<8x32xbf16>, vector<8x32xf32> -> vector<8x32xf32>
    %134 = arith.addf %110, %133 : vector<8x32xf32>
    %135 = arith.addf %1, %134 : vector<8x32xf32>
    %c0_40 = arith.constant 0 : index
    %c0_41 = arith.constant 0 : index
    %136 = vector.load %arg6[%c0_40, %c0_41] : memref<1x32xf32, #tpu.memory_space<vmem>>, vector<1x32xf32>
    %137 = vector.broadcast %136 : vector<1x32xf32> to vector<8x32xf32>
    %138 = arith.addf %135, %137 : vector<8x32xf32>
    %c0_42 = arith.constant 0 : index
    %c0_43 = arith.constant 0 : index
    %139 = vector.load %arg7[%c0_42, %c0_43] : memref<1x32xf32, #tpu.memory_space<vmem>>, vector<1x32xf32>
    %c0_44 = arith.constant 0 : index
    %c0_45 = arith.constant 0 : index
    %140 = vector.load %arg8[%c0_44, %c0_45] : memref<1x32xf32, #tpu.memory_space<vmem>>, vector<1x32xf32>
    %cst_46 = arith.constant dense<0.000000e+00> : vector<8xf32>
    %141 = vector.multi_reduction <add>, %138, %cst_46 [1] : vector<8x32xf32> to vector<8xf32>
    %142 = vector.shape_cast %141 : vector<8xf32> to vector<8x1xf32>
    %cst_47 = arith.constant 3.200000e+01 : f32
    %143 = vector.broadcast %cst_47 : f32 to vector<8x1xf32>
    %144 = arith.divf %142, %143 : vector<8x1xf32>
    %145 = vector.broadcast %144 : vector<8x1xf32> to vector<8x32xf32>
    %146 = arith.subf %138, %145 : vector<8x32xf32>
    %147 = arith.mulf %146, %146 : vector<8x32xf32>
    %cst_48 = arith.constant dense<0.000000e+00> : vector<8xf32>
    %148 = vector.multi_reduction <add>, %147, %cst_48 [1] : vector<8x32xf32> to vector<8xf32>
    %149 = vector.shape_cast %148 : vector<8xf32> to vector<8x1xf32>
    %cst_49 = arith.constant 3.200000e+01 : f32
    %150 = vector.broadcast %cst_49 : f32 to vector<8x1xf32>
    %151 = arith.divf %149, %150 : vector<8x1xf32>
    %cst_50 = arith.constant 9.99999974E-6 : f32
    %152 = vector.broadcast %cst_50 : f32 to vector<8x1xf32>
    %153 = arith.addf %151, %152 : vector<8x1xf32>
    %154 = math.rsqrt %153 : vector<8x1xf32>
    %155 = vector.broadcast %154 : vector<8x1xf32> to vector<8x32xf32>
    %156 = arith.mulf %146, %155 : vector<8x32xf32>
    %157 = vector.broadcast %139 : vector<1x32xf32> to vector<8x32xf32>
    %158 = arith.mulf %156, %157 : vector<8x32xf32>
    %159 = vector.broadcast %140 : vector<1x32xf32> to vector<8x32xf32>
    %160 = arith.addf %158, %159 : vector<8x32xf32>
    %161 = arith.truncf %160 : vector<8x32xf32> to vector<8x32xbf16>
    %c0_51 = arith.constant 0 : index
    %c0_52 = arith.constant 0 : index
    %162 = vector.load %arg9[%c0_51, %c0_52] : memref<32x128xbf16, #tpu.memory_space<vmem>>, vector<32x128xbf16>
    %cst_53 = arith.constant dense<0.000000e+00> : vector<8x128xf32>
    %163 = tpu.matmul %161, %162, %cst_53 {dimension_numbers = #tpu.dot_dimension_numbers<[1], [0], [0], [1], [0, 0, 1, 1], [], []>} : vector<8x32xbf16>, vector<32x128xbf16>, vector<8x128xf32> -> vector<8x128xf32>
    %c0_54 = arith.constant 0 : index
    %c0_55 = arith.constant 0 : index
    %164 = vector.load %arg10[%c0_54, %c0_55] : memref<1x128xf32, #tpu.memory_space<vmem>>, vector<1x128xf32>
    %165 = vector.broadcast %164 : vector<1x128xf32> to vector<8x128xf32>
    %166 = arith.addf %163, %165 : vector<8x128xf32>
    %cst_56 = arith.constant 0.000000e+00 : f32
    %167 = vector.broadcast %cst_56 : f32 to vector<8x128xf32>
    %168 = arith.cmpf ogt, %166, %167 : vector<8x128xf32>
    %cst_57 = arith.constant 0.00999999977 : f32
    %169 = vector.broadcast %cst_57 : f32 to vector<8x128xf32>
    %170 = arith.mulf %169, %166 : vector<8x128xf32>
    %171 = arith.select %168, %166, %170 : vector<8x128xi1>, vector<8x128xf32>
    %172 = arith.truncf %171 : vector<8x128xf32> to vector<8x128xbf16>
    %c0_58 = arith.constant 0 : index
    %c0_59 = arith.constant 0 : index
    %173 = vector.load %arg11[%c0_58, %c0_59] : memref<128x32xbf16, #tpu.memory_space<vmem>>, vector<128x32xbf16>
    %cst_60 = arith.constant dense<0.000000e+00> : vector<8x32xf32>
    %174 = tpu.matmul %172, %173, %cst_60 {dimension_numbers = #tpu.dot_dimension_numbers<[1], [0], [0], [1], [0, 0, 1, 1], [], []>} : vector<8x128xbf16>, vector<128x32xbf16>, vector<8x32xf32> -> vector<8x32xf32>
    %c0_61 = arith.constant 0 : index
    %c0_62 = arith.constant 0 : index
    %175 = vector.load %arg12[%c0_61, %c0_62] : memref<1x32xf32, #tpu.memory_space<vmem>>, vector<1x32xf32>
    %176 = vector.broadcast %175 : vector<1x32xf32> to vector<8x32xf32>
    %177 = arith.addf %174, %176 : vector<8x32xf32>
    %178 = arith.addf %138, %177 : vector<8x32xf32>
    %179 = vector.shape_cast %178 : vector<8x32xf32> to vector<1x8x32xf32>
    %c0_63 = arith.constant 0 : index
    %c0_64 = arith.constant 0 : index
    %c0_65 = arith.constant 0 : index
    %180 = vector.load %arg13[%c0_63, %c0_64, %c0_65] : memref<1x8x96xf32, #tpu.memory_space<vmem>>, vector<1x8x32xf32>
    tpu.vector_store %arg13[%c0_63, %c0_64, %c0_65], %179 {strides = array<i32>} : memref<1x8x96xf32, #tpu.memory_space<vmem>>, vector<1x8x32xf32>,
    return
  }
  func.func @transform_0(%arg0: i32) -> (i32, i32, i32) {
    %c0_i32 = arith.constant 0 : i32
    %c0_i32_0 = arith.constant 0 : i32
    %c0_i32_1 = arith.constant 0 : i32
    return %arg0, %c0_i32, %c0_i32_0 : i32, i32, i32
  }
  func.func @transform_1(%arg0: i32) -> (i32, i32) {
    %c0_i32 = arith.constant 0 : i32
    %c0_i32_0 = arith.constant 0 : i32
    %c0_i32_1 = arith.constant 0 : i32
    return %c0_i32, %c0_i32_0 : i32, i32
  }
  func.func @transform_2(%arg0: i32) -> (i32, i32) {
    %c0_i32 = arith.constant 0 : i32
    %c0_i32_0 = arith.constant 0 : i32
    %c0_i32_1 = arith.constant 0 : i32
    return %c0_i32, %c0_i32_0 : i32, i32
  }
  func.func @transform_3(%arg0: i32) -> (i32, i32) {
    %c0_i32 = arith.constant 0 : i32
    %c0_i32_0 = arith.constant 0 : i32
    %c0_i32_1 = arith.constant 0 : i32
    return %c0_i32, %c0_i32_0 : i32, i32
  }
  func.func @transform_4(%arg0: i32) -> (i32, i32) {
    %c0_i32 = arith.constant 0 : i32
    %c0_i32_0 = arith.constant 0 : i32
    %c0_i32_1 = arith.constant 0 : i32
    return %c0_i32, %c0_i32_0 : i32, i32
  }
  func.func @transform_5(%arg0: i32) -> (i32, i32) {
    %c0_i32 = arith.constant 0 : i32
    %c0_i32_0 = arith.constant 0 : i32
    %c0_i32_1 = arith.constant 0 : i32
    return %c0_i32, %c0_i32_0 : i32, i32
  }
  func.func @transform_6(%arg0: i32) -> (i32, i32) {
    %c0_i32 = arith.constant 0 : i32
    %c0_i32_0 = arith.constant 0 : i32
    %c0_i32_1 = arith.constant 0 : i32
    return %c0_i32, %c0_i32_0 : i32, i32
  }
  func.func @transform_7(%arg0: i32) -> (i32, i32) {
    %c0_i32 = arith.constant 0 : i32
    %c0_i32_0 = arith.constant 0 : i32
    %c0_i32_1 = arith.constant 0 : i32
    return %c0_i32, %c0_i32_0 : i32, i32
  }
  func.func @transform_8(%arg0: i32) -> (i32, i32) {
    %c0_i32 = arith.constant 0 : i32
    %c0_i32_0 = arith.constant 0 : i32
    %c0_i32_1 = arith.constant 0 : i32
    return %c0_i32, %c0_i32_0 : i32, i32
  }
  func.func @transform_9(%arg0: i32) -> (i32, i32) {
    %c0_i32 = arith.constant 0 : i32
    %c0_i32_0 = arith.constant 0 : i32
    %c0_i32_1 = arith.constant 0 : i32
    return %c0_i32, %c0_i32_0 : i32, i32
  }
  func.func @transform_10(%arg0: i32) -> (i32, i32) {
    %c0_i32 = arith.constant 0 : i32
    %c0_i32_0 = arith.constant 0 : i32
    %c0_i32_1 = arith.constant 0 : i32
    return %c0_i32, %c0_i32_0 : i32, i32
  }
  func.func @transform_11(%arg0: i32) -> (i32, i32) {
    %c0_i32 = arith.constant 0 : i32
    %c0_i32_0 = arith.constant 0 : i32
    %c0_i32_1 = arith.constant 0 : i32
    return %c0_i32, %c0_i32_0 : i32, i32
  }
  func.func @transform_12(%arg0: i32) -> (i32, i32, i32) {
    %c0_i32 = arith.constant 0 : i32
    %c0_i32_0 = arith.constant 0 : i32
    %c0_i32_1 = arith.constant 0 : i32
    return %arg0, %c0_i32, %c0_i32_0 : i32, i32, i32
  }
}

module attributes {stable_mosaic.version = 11 : i64} {
  func.func @encoder_block_kernel(%arg0: i32, %arg1: memref<1x8x32xf32, #tpu.memory_space<vmem>>, %arg2: memref<1x32xf32, #tpu.memory_space<vmem>>, %arg3: memref<1x32xf32, #tpu.memory_space<vmem>>, %arg4: memref<32x96xbf16, #tpu.memory_space<vmem>>, %arg5: memref<32x32xbf16, #tpu.memory_space<vmem>>, %arg6: memref<1x32xf32, #tpu.memory_space<vmem>>, %arg7: memref<1x32xf32, #tpu.memory_space<vmem>>, %arg8: memref<1x32xf32, #tpu.memory_space<vmem>>, %arg9: memref<32x128xbf16, #tpu.memory_space<vmem>>, %arg10: memref<1x128xf32, #tpu.memory_space<vmem>>, %arg11: memref<128x32xbf16, #tpu.memory_space<vmem>>, %arg12: memref<1x32xf32, #tpu.memory_space<vmem>>, %arg13: memref<1x8x96xf32, #tpu.memory_space<vmem>>) attributes {dimension_semantics = [#tpu.dimension_semantics<parallel>], iteration_bounds = array<i64: 2>, scalar_prefetch = 0 : i64, scratch_operands = 0 : i64, tpu.core_type = #tpu.core_type<tc>, window_params = [{transform_indices = @transform_0, window_bounds = array<i64: 1, 8, 32>}, {pipeline_mode = #tpu.pipeline_mode<synchronous>, transform_indices = @transform_1, window_bounds = array<i64: 1, 32>}, {pipeline_mode = #tpu.pipeline_mode<synchronous>, transform_indices = @transform_2, window_bounds = array<i64: 1, 32>}, {pipeline_mode = #tpu.pipeline_mode<synchronous>, transform_indices = @transform_3, window_bounds = array<i64: 32, 96>}, {pipeline_mode = #tpu.pipeline_mode<synchronous>, transform_indices = @transform_4, window_bounds = array<i64: 32, 32>}, {pipeline_mode = #tpu.pipeline_mode<synchronous>, transform_indices = @transform_5, window_bounds = array<i64: 1, 32>}, {pipeline_mode = #tpu.pipeline_mode<synchronous>, transform_indices = @transform_6, window_bounds = array<i64: 1, 32>}, {pipeline_mode = #tpu.pipeline_mode<synchronous>, transform_indices = @transform_7, window_bounds = array<i64: 1, 32>}, {pipeline_mode = #tpu.pipeline_mode<synchronous>, transform_indices = @transform_8, window_bounds = array<i64: 32, 128>}, {pipeline_mode = #tpu.pipeline_mode<synchronous>, transform_indices = @transform_9, window_bounds = array<i64: 1, 128>}, {pipeline_mode = #tpu.pipeline_mode<synchronous>, transform_indices = @transform_10, window_bounds = array<i64: 128, 32>}, {pipeline_mode = #tpu.pipeline_mode<synchronous>, transform_indices = @transform_11, window_bounds = array<i64: 1, 32>}, {transform_indices = @transform_12, window_bounds = array<i64: 1, 8, 96>}]} {
    %c0 = arith.constant 0 : index
    %c0_0 = arith.constant 0 : index
    %c0_1 = arith.constant 0 : index
    %0 = vector.load %arg1[%c0, %c0_0, %c0_1] : memref<1x8x32xf32, #tpu.memory_space<vmem>>, vector<1x8x32xf32>
    %1 = vector.shape_cast %0 : vector<1x8x32xf32> to vector<8x32xf32>
    %c0_2 = arith.constant 0 : index
    %c0_3 = arith.constant 0 : index
    %2 = vector.load %arg2[%c0_2, %c0_3] : memref<1x32xf32, #tpu.memory_space<vmem>>, vector<1x32xf32>
    %c0_4 = arith.constant 0 : index
    %c0_5 = arith.constant 0 : index
    %3 = vector.load %arg3[%c0_4, %c0_5] : memref<1x32xf32, #tpu.memory_space<vmem>>, vector<1x32xf32>
    %cst = arith.constant dense<0.000000e+00> : vector<8xf32>
    %4 = vector.multi_reduction <add>, %1, %cst [1] : vector<8x32xf32> to vector<8xf32>
    %5 = vector.shape_cast %4 : vector<8xf32> to vector<8x1xf32>
    %cst_6 = arith.constant 3.200000e+01 : f32
    %6 = vector.broadcast %cst_6 : f32 to vector<8x1xf32>
    %7 = arith.divf %5, %6 : vector<8x1xf32>
    %8 = vector.broadcast %7 : vector<8x1xf32> to vector<8x32xf32>
    %9 = arith.subf %1, %8 : vector<8x32xf32>
    %10 = arith.mulf %9, %9 : vector<8x32xf32>
    %cst_7 = arith.constant dense<0.000000e+00> : vector<8xf32>
    %11 = vector.multi_reduction <add>, %10, %cst_7 [1] : vector<8x32xf32> to vector<8xf32>
    %12 = vector.shape_cast %11 : vector<8xf32> to vector<8x1xf32>
    %cst_8 = arith.constant 3.200000e+01 : f32
    %13 = vector.broadcast %cst_8 : f32 to vector<8x1xf32>
    %14 = arith.divf %12, %13 : vector<8x1xf32>
    %cst_9 = arith.constant 9.99999974E-6 : f32
    %15 = vector.broadcast %cst_9 : f32 to vector<8x1xf32>
    %16 = arith.addf %14, %15 : vector<8x1xf32>
    %17 = math.rsqrt %16 : vector<8x1xf32>
    %18 = vector.broadcast %17 : vector<8x1xf32> to vector<8x32xf32>
    %19 = arith.mulf %9, %18 : vector<8x32xf32>
    %20 = vector.broadcast %2 : vector<1x32xf32> to vector<8x32xf32>
    %21 = arith.mulf %19, %20 : vector<8x32xf32>
    %22 = vector.broadcast %3 : vector<1x32xf32> to vector<8x32xf32>
    %23 = arith.addf %21, %22 : vector<8x32xf32>
    %24 = arith.truncf %23 : vector<8x32xf32> to vector<8x32xbf16>
    %c0_10 = arith.constant 0 : index
    %c0_11 = arith.constant 0 : index
    %25 = vector.load %arg4[%c0_10, %c0_11] : memref<32x96xbf16, #tpu.memory_space<vmem>>, vector<32x96xbf16>
    %cst_12 = arith.constant dense<0.000000e+00> : vector<8x96xf32>
    %26 = tpu.matmul %24, %25, %cst_12 {dimension_numbers = #tpu.dot_dimension_numbers<[1], [0], [0], [1], [0, 0, 1, 1], [], []>} : vector<8x32xbf16>, vector<32x96xbf16>, vector<8x96xf32> -> vector<8x96xf32>
    %27 = vector.extract_strided_slice %26 {offsets = [0, 32], sizes = [8, 32], strides = [1, 1]} : vector<8x96xf32> to vector<8x32xf32>
    %28 = vector.extract_strided_slice %26 {offsets = [0, 64], sizes = [8, 32], strides = [1, 1]} : vector<8x96xf32> to vector<8x32xf32>
    %29 = vector.shape_cast %27 : vector<8x32xf32> to vector<1x8x32xf32>
    %c0_13 = arith.constant 0 : index
    %c0_14 = arith.constant 0 : index
    %c32 = arith.constant 32 : index
    %30 = vector.load %arg13[%c0_13, %c0_14, %c32] : memref<1x8x96xf32, #tpu.memory_space<vmem>>, vector<1x8x32xf32>
    tpu.vector_store %arg13[%c0_13, %c0_14, %c32], %29 {strides = array<i32>} : memref<1x8x96xf32, #tpu.memory_space<vmem>>, vector<1x8x32xf32>,
    %31 = vector.shape_cast %28 : vector<8x32xf32> to vector<1x8x32xf32>
    %c0_15 = arith.constant 0 : index
    %c0_16 = arith.constant 0 : index
    %c64 = arith.constant 64 : index
    %32 = vector.load %arg13[%c0_15, %c0_16, %c64] : memref<1x8x96xf32, #tpu.memory_space<vmem>>, vector<1x8x32xf32>
    tpu.vector_store %arg13[%c0_15, %c0_16, %c64], %31 {strides = array<i32>} : memref<1x8x96xf32, #tpu.memory_space<vmem>>, vector<1x8x32xf32>,
    %33 = vector.extract_strided_slice %26 {offsets = [0, 0], sizes = [8, 32], strides = [1, 1]} : vector<8x96xf32> to vector<8x32xf32>
    %34 = vector.shape_cast %33 : vector<8x32xf32> to vector<1x8x32xf32>
    %35 = vector.shape_cast %27 : vector<8x32xf32> to vector<1x8x32xf32>
    %36 = vector.shape_cast %28 : vector<8x32xf32> to vector<1x8x32xf32>
    %c0_17 = arith.constant 0 : index
    %c0_18 = arith.constant 0 : index
    %37 = vector.load %arg5[%c0_17, %c0_18] : memref<32x32xbf16, #tpu.memory_space<vmem>>, vector<32x32xbf16>
    %cst_19 = arith.constant 0.000000e+00 : f32
    %38 = vector.broadcast %cst_19 : f32 to vector<8x32xf32>
    %39 = vector.extract_strided_slice %34 {offsets = [0, 0, 0], sizes = [1, 8, 8], strides = [1, 1, 1]} : vector<1x8x32xf32> to vector<1x8x8xf32>
    %40 = arith.truncf %39 : vector<1x8x8xf32> to vector<1x8x8xbf16>
    %41 = vector.extract_strided_slice %35 {offsets = [0, 0, 0], sizes = [1, 8, 8], strides = [1, 1, 1]} : vector<1x8x32xf32> to vector<1x8x8xf32>
    %42 = arith.truncf %41 : vector<1x8x8xf32> to vector<1x8x8xbf16>
    %43 = vector.extract_strided_slice %36 {offsets = [0, 0, 0], sizes = [1, 8, 8], strides = [1, 1, 1]} : vector<1x8x32xf32> to vector<1x8x8xf32>
    %44 = arith.truncf %43 : vector<1x8x8xf32> to vector<1x8x8xbf16>
    "tpu.trace_start"() <{level = 10 : i32, message = "bqd,bkd->bqk"}> : () -> ()
    %cst_20 = arith.constant dense<0.000000e+00> : vector<1x8x8xf32>
    %45 = tpu.matmul %40, %42, %cst_20 {dimension_numbers = #tpu.dot_dimension_numbers<[2], [2], [1], [1], [0, 0, 0, 1, 1, 1], [0], [0]>} : vector<1x8x8xbf16>, vector<1x8x8xbf16>, vector<1x8x8xf32> -> vector<1x8x8xf32>
    "tpu.trace_stop"() : () -> ()
    %cst_21 = arith.constant dense<0xFF800000> : vector<1x8xf32>
    %46 = vector.multi_reduction <maximumf>, %45, %cst_21 [1] : vector<1x8x8xf32> to vector<1x8xf32>
    %47 = vector.shape_cast %46 : vector<1x8xf32> to vector<1x1x8xf32>
    %48 = vector.broadcast %47 : vector<1x1x8xf32> to vector<1x8x8xf32>
    %49 = arith.subf %45, %48 : vector<1x8x8xf32>
    %50 = math.exp %49 : vector<1x8x8xf32>
    %cst_22 = arith.constant dense<0.000000e+00> : vector<1x8xf32>
    %51 = vector.multi_reduction <add>, %50, %cst_22 [1] : vector<1x8x8xf32> to vector<1x8xf32>
    %52 = vector.shape_cast %51 : vector<1x8xf32> to vector<1x1x8xf32>
    %53 = tpu.reciprocal %52 {approx = true} : vector<1x1x8xf32> -> vector<1x1x8xf32>
    %54 = vector.broadcast %53 : vector<1x1x8xf32> to vector<1x8x8xf32>
    %55 = arith.mulf %50, %54 : vector<1x8x8xf32>
    %56 = arith.truncf %55 : vector<1x8x8xf32> to vector<1x8x8xbf16>
    "tpu.trace_start"() <{level = 10 : i32, message = "bqk,bkd->bqd"}> : () -> ()
    %cst_23 = arith.constant dense<0.000000e+00> : vector<1x8x8xf32>
    %57 = tpu.matmul %56, %44, %cst_23 {dimension_numbers = #tpu.dot_dimension_numbers<[2], [1], [1], [2], [0, 0, 0, 1, 1, 2], [0], [0]>} : vector<1x8x8xbf16>, vector<1x8x8xbf16>, vector<1x8x8xf32> -> vector<1x8x8xf32>
    "tpu.trace_stop"() : () -> ()
    %58 = vector.shape_cast %57 : vector<1x8x8xf32> to vector<8x8xf32>
    %59 = arith.truncf %58 : vector<8x8xf32> to vector<8x8xbf16>
    %60 = vector.extract_strided_slice %37 {offsets = [0, 0], sizes = [8, 32], strides = [1, 1]} : vector<32x32xbf16> to vector<8x32xbf16>
    %cst_24 = arith.constant dense<0.000000e+00> : vector<8x32xf32>
    %61 = tpu.matmul %59, %60, %cst_24 {dimension_numbers = #tpu.dot_dimension_numbers<[1], [0], [0], [1], [0, 0, 1, 1], [], []>} : vector<8x8xbf16>, vector<8x32xbf16>, vector<8x32xf32> -> vector<8x32xf32>
    %62 = arith.addf %38, %61 : vector<8x32xf32>
    %63 = vector.extract_strided_slice %34 {offsets = [0, 0, 8], sizes = [1, 8, 8], strides = [1, 1, 1]} : vector<1x8x32xf32> to vector<1x8x8xf32>
    %64 = arith.truncf %63 : vector<1x8x8xf32> to vector<1x8x8xbf16>
    %65 = vector.extract_strided_slice %35 {offsets = [0, 0, 8], sizes = [1, 8, 8], strides = [1, 1, 1]} : vector<1x8x32xf32> to vector<1x8x8xf32>
    %66 = arith.truncf %65 : vector<1x8x8xf32> to vector<1x8x8xbf16>
    %67 = vector.extract_strided_slice %36 {offsets = [0, 0, 8], sizes = [1, 8, 8], strides = [1, 1, 1]} : vector<1x8x32xf32> to vector<1x8x8xf32>
    %68 = arith.truncf %67 : vector<1x8x8xf32> to vector<1x8x8xbf16>
    "tpu.trace_start"() <{level = 10 : i32, message = "bqd,bkd->bqk"}> : () -> ()
    %cst_25 = arith.constant dense<0.000000e+00> : vector<1x8x8xf32>
    %69 = tpu.matmul %64, %66, %cst_25 {dimension_numbers = #tpu.dot_dimension_numbers<[2], [2], [1], [1], [0, 0, 0, 1, 1, 1], [0], [0]>} : vector<1x8x8xbf16>, vector<1x8x8xbf16>, vector<1x8x8xf32> -> vector<1x8x8xf32>
    "tpu.trace_stop"() : () -> ()
    %cst_26 = arith.constant dense<0xFF800000> : vector<1x8xf32>
    %70 = vector.multi_reduction <maximumf>, %69, %cst_26 [1] : vector<1x8x8xf32> to vector<1x8xf32>
    %71 = vector.shape_cast %70 : vector<1x8xf32> to vector<1x1x8xf32>
    %72 = vector.broadcast %71 : vector<1x1x8xf32> to vector<1x8x8xf32>
    %73 = arith.subf %69, %72 : vector<1x8x8xf32>
    %74 = math.exp %73 : vector<1x8x8xf32>
    %cst_27 = arith.constant dense<0.000000e+00> : vector<1x8xf32>
    %75 = vector.multi_reduction <add>, %74, %cst_27 [1] : vector<1x8x8xf32> to vector<1x8xf32>
    %76 = vector.shape_cast %75 : vector<1x8xf32> to vector<1x1x8xf32>
    %77 = tpu.reciprocal %76 {approx = true} : vector<1x1x8xf32> -> vector<1x1x8xf32>
    %78 = vector.broadcast %77 : vector<1x1x8xf32> to vector<1x8x8xf32>
    %79 = arith.mulf %74, %78 : vector<1x8x8xf32>
    %80 = arith.truncf %79 : vector<1x8x8xf32> to vector<1x8x8xbf16>
    "tpu.trace_start"() <{level = 10 : i32, message = "bqk,bkd->bqd"}> : () -> ()
    %cst_28 = arith.constant dense<0.000000e+00> : vector<1x8x8xf32>
    %81 = tpu.matmul %80, %68, %cst_28 {dimension_numbers = #tpu.dot_dimension_numbers<[2], [1], [1], [2], [0, 0, 0, 1, 1, 2], [0], [0]>} : vector<1x8x8xbf16>, vector<1x8x8xbf16>, vector<1x8x8xf32> -> vector<1x8x8xf32>
    "tpu.trace_stop"() : () -> ()
    %82 = vector.shape_cast %81 : vector<1x8x8xf32> to vector<8x8xf32>
    %83 = arith.truncf %82 : vector<8x8xf32> to vector<8x8xbf16>
    %84 = vector.extract_strided_slice %37 {offsets = [8, 0], sizes = [8, 32], strides = [1, 1]} : vector<32x32xbf16> to vector<8x32xbf16>
    %cst_29 = arith.constant dense<0.000000e+00> : vector<8x32xf32>
    %85 = tpu.matmul %83, %84, %cst_29 {dimension_numbers = #tpu.dot_dimension_numbers<[1], [0], [0], [1], [0, 0, 1, 1], [], []>} : vector<8x8xbf16>, vector<8x32xbf16>, vector<8x32xf32> -> vector<8x32xf32>
    %86 = arith.addf %62, %85 : vector<8x32xf32>
    %87 = vector.extract_strided_slice %34 {offsets = [0, 0, 16], sizes = [1, 8, 8], strides = [1, 1, 1]} : vector<1x8x32xf32> to vector<1x8x8xf32>
    %88 = arith.truncf %87 : vector<1x8x8xf32> to vector<1x8x8xbf16>
    %89 = vector.extract_strided_slice %35 {offsets = [0, 0, 16], sizes = [1, 8, 8], strides = [1, 1, 1]} : vector<1x8x32xf32> to vector<1x8x8xf32>
    %90 = arith.truncf %89 : vector<1x8x8xf32> to vector<1x8x8xbf16>
    %91 = vector.extract_strided_slice %36 {offsets = [0, 0, 16], sizes = [1, 8, 8], strides = [1, 1, 1]} : vector<1x8x32xf32> to vector<1x8x8xf32>
    %92 = arith.truncf %91 : vector<1x8x8xf32> to vector<1x8x8xbf16>
    "tpu.trace_start"() <{level = 10 : i32, message = "bqd,bkd->bqk"}> : () -> ()
    %cst_30 = arith.constant dense<0.000000e+00> : vector<1x8x8xf32>
    %93 = tpu.matmul %88, %90, %cst_30 {dimension_numbers = #tpu.dot_dimension_numbers<[2], [2], [1], [1], [0, 0, 0, 1, 1, 1], [0], [0]>} : vector<1x8x8xbf16>, vector<1x8x8xbf16>, vector<1x8x8xf32> -> vector<1x8x8xf32>
    "tpu.trace_stop"() : () -> ()
    %cst_31 = arith.constant dense<0xFF800000> : vector<1x8xf32>
    %94 = vector.multi_reduction <maximumf>, %93, %cst_31 [1] : vector<1x8x8xf32> to vector<1x8xf32>
    %95 = vector.shape_cast %94 : vector<1x8xf32> to vector<1x1x8xf32>
    %96 = vector.broadcast %95 : vector<1x1x8xf32> to vector<1x8x8xf32>
    %97 = arith.subf %93, %96 : vector<1x8x8xf32>
    %98 = math.exp %97 : vector<1x8x8xf32>
    %cst_32 = arith.constant dense<0.000000e+00> : vector<1x8xf32>
    %99 = vector.multi_reduction <add>, %98, %cst_32 [1] : vector<1x8x8xf32> to vector<1x8xf32>
    %100 = vector.shape_cast %99 : vector<1x8xf32> to vector<1x1x8xf32>
    %101 = tpu.reciprocal %100 {approx = true} : vector<1x1x8xf32> -> vector<1x1x8xf32>
    %102 = vector.broadcast %101 : vector<1x1x8xf32> to vector<1x8x8xf32>
    %103 = arith.mulf %98, %102 : vector<1x8x8xf32>
    %104 = arith.truncf %103 : vector<1x8x8xf32> to vector<1x8x8xbf16>
    "tpu.trace_start"() <{level = 10 : i32, message = "bqk,bkd->bqd"}> : () -> ()
    %cst_33 = arith.constant dense<0.000000e+00> : vector<1x8x8xf32>
    %105 = tpu.matmul %104, %92, %cst_33 {dimension_numbers = #tpu.dot_dimension_numbers<[2], [1], [1], [2], [0, 0, 0, 1, 1, 2], [0], [0]>} : vector<1x8x8xbf16>, vector<1x8x8xbf16>, vector<1x8x8xf32> -> vector<1x8x8xf32>
    "tpu.trace_stop"() : () -> ()
    %106 = vector.shape_cast %105 : vector<1x8x8xf32> to vector<8x8xf32>
    %107 = arith.truncf %106 : vector<8x8xf32> to vector<8x8xbf16>
    %108 = vector.extract_strided_slice %37 {offsets = [16, 0], sizes = [8, 32], strides = [1, 1]} : vector<32x32xbf16> to vector<8x32xbf16>
    %cst_34 = arith.constant dense<0.000000e+00> : vector<8x32xf32>
    %109 = tpu.matmul %107, %108, %cst_34 {dimension_numbers = #tpu.dot_dimension_numbers<[1], [0], [0], [1], [0, 0, 1, 1], [], []>} : vector<8x8xbf16>, vector<8x32xbf16>, vector<8x32xf32> -> vector<8x32xf32>
    %110 = arith.addf %86, %109 : vector<8x32xf32>
    %111 = vector.extract_strided_slice %34 {offsets = [0, 0, 24], sizes = [1, 8, 8], strides = [1, 1, 1]} : vector<1x8x32xf32> to vector<1x8x8xf32>
    %112 = arith.truncf %111 : vector<1x8x8xf32> to vector<1x8x8xbf16>
    %113 = vector.extract_strided_slice %35 {offsets = [0, 0, 24], sizes = [1, 8, 8], strides = [1, 1, 1]} : vector<1x8x32xf32> to vector<1x8x8xf32>
    %114 = arith.truncf %113 : vector<1x8x8xf32> to vector<1x8x8xbf16>
    %115 = vector.extract_strided_slice %36 {offsets = [0, 0, 24], sizes = [1, 8, 8], strides = [1, 1, 1]} : vector<1x8x32xf32> to vector<1x8x8xf32>
    %116 = arith.truncf %115 : vector<1x8x8xf32> to vector<1x8x8xbf16>
    "tpu.trace_start"() <{level = 10 : i32, message = "bqd,bkd->bqk"}> : () -> ()
    %cst_35 = arith.constant dense<0.000000e+00> : vector<1x8x8xf32>
    %117 = tpu.matmul %112, %114, %cst_35 {dimension_numbers = #tpu.dot_dimension_numbers<[2], [2], [1], [1], [0, 0, 0, 1, 1, 1], [0], [0]>} : vector<1x8x8xbf16>, vector<1x8x8xbf16>, vector<1x8x8xf32> -> vector<1x8x8xf32>
    "tpu.trace_stop"() : () -> ()
    %cst_36 = arith.constant dense<0xFF800000> : vector<1x8xf32>
    %118 = vector.multi_reduction <maximumf>, %117, %cst_36 [1] : vector<1x8x8xf32> to vector<1x8xf32>
    %119 = vector.shape_cast %118 : vector<1x8xf32> to vector<1x1x8xf32>
    %120 = vector.broadcast %119 : vector<1x1x8xf32> to vector<1x8x8xf32>
    %121 = arith.subf %117, %120 : vector<1x8x8xf32>
    %122 = math.exp %121 : vector<1x8x8xf32>
    %cst_37 = arith.constant dense<0.000000e+00> : vector<1x8xf32>
    %123 = vector.multi_reduction <add>, %122, %cst_37 [1] : vector<1x8x8xf32> to vector<1x8xf32>
    %124 = vector.shape_cast %123 : vector<1x8xf32> to vector<1x1x8xf32>
    %125 = tpu.reciprocal %124 {approx = true} : vector<1x1x8xf32> -> vector<1x1x8xf32>
    %126 = vector.broadcast %125 : vector<1x1x8xf32> to vector<1x8x8xf32>
    %127 = arith.mulf %122, %126 : vector<1x8x8xf32>
    %128 = arith.truncf %127 : vector<1x8x8xf32> to vector<1x8x8xbf16>
    "tpu.trace_start"() <{level = 10 : i32, message = "bqk,bkd->bqd"}> : () -> ()
    %cst_38 = arith.constant dense<0.000000e+00> : vector<1x8x8xf32>
    %129 = tpu.matmul %128, %116, %cst_38 {dimension_numbers = #tpu.dot_dimension_numbers<[2], [1], [1], [2], [0, 0, 0, 1, 1, 2], [0], [0]>} : vector<1x8x8xbf16>, vector<1x8x8xbf16>, vector<1x8x8xf32> -> vector<1x8x8xf32>
    "tpu.trace_stop"() : () -> ()
    %130 = vector.shape_cast %129 : vector<1x8x8xf32> to vector<8x8xf32>
    %131 = arith.truncf %130 : vector<8x8xf32> to vector<8x8xbf16>
    %132 = vector.extract_strided_slice %37 {offsets = [24, 0], sizes = [8, 32], strides = [1, 1]} : vector<32x32xbf16> to vector<8x32xbf16>
    %cst_39 = arith.constant dense<0.000000e+00> : vector<8x32xf32>
    %133 = tpu.matmul %131, %132, %cst_39 {dimension_numbers = #tpu.dot_dimension_numbers<[1], [0], [0], [1], [0, 0, 1, 1], [], []>} : vector<8x8xbf16>, vector<8x32xbf16>, vector<8x32xf32> -> vector<8x32xf32>
    %134 = arith.addf %110, %133 : vector<8x32xf32>
    %135 = arith.addf %1, %134 : vector<8x32xf32>
    %c0_40 = arith.constant 0 : index
    %c0_41 = arith.constant 0 : index
    %136 = vector.load %arg6[%c0_40, %c0_41] : memref<1x32xf32, #tpu.memory_space<vmem>>, vector<1x32xf32>
    %137 = vector.broadcast %136 : vector<1x32xf32> to vector<8x32xf32>
    %138 = arith.addf %135, %137 : vector<8x32xf32>
    %c0_42 = arith.constant 0 : index
    %c0_43 = arith.constant 0 : index
    %139 = vector.load %arg7[%c0_42, %c0_43] : memref<1x32xf32, #tpu.memory_space<vmem>>, vector<1x32xf32>
    %c0_44 = arith.constant 0 : index
    %c0_45 = arith.constant 0 : index
    %140 = vector.load %arg8[%c0_44, %c0_45] : memref<1x32xf32, #tpu.memory_space<vmem>>, vector<1x32xf32>
    %cst_46 = arith.constant dense<0.000000e+00> : vector<8xf32>
    %141 = vector.multi_reduction <add>, %138, %cst_46 [1] : vector<8x32xf32> to vector<8xf32>
    %142 = vector.shape_cast %141 : vector<8xf32> to vector<8x1xf32>
    %cst_47 = arith.constant 3.200000e+01 : f32
    %143 = vector.broadcast %cst_47 : f32 to vector<8x1xf32>
    %144 = arith.divf %142, %143 : vector<8x1xf32>
    %145 = vector.broadcast %144 : vector<8x1xf32> to vector<8x32xf32>
    %146 = arith.subf %138, %145 : vector<8x32xf32>
    %147 = arith.mulf %146, %146 : vector<8x32xf32>
    %cst_48 = arith.constant dense<0.000000e+00> : vector<8xf32>
    %148 = vector.multi_reduction <add>, %147, %cst_48 [1] : vector<8x32xf32> to vector<8xf32>
    %149 = vector.shape_cast %148 : vector<8xf32> to vector<8x1xf32>
    %cst_49 = arith.constant 3.200000e+01 : f32
    %150 = vector.broadcast %cst_49 : f32 to vector<8x1xf32>
    %151 = arith.divf %149, %150 : vector<8x1xf32>
    %cst_50 = arith.constant 9.99999974E-6 : f32
    %152 = vector.broadcast %cst_50 : f32 to vector<8x1xf32>
    %153 = arith.addf %151, %152 : vector<8x1xf32>
    %154 = math.rsqrt %153 : vector<8x1xf32>
    %155 = vector.broadcast %154 : vector<8x1xf32> to vector<8x32xf32>
    %156 = arith.mulf %146, %155 : vector<8x32xf32>
    %157 = vector.broadcast %139 : vector<1x32xf32> to vector<8x32xf32>
    %158 = arith.mulf %156, %157 : vector<8x32xf32>
    %159 = vector.broadcast %140 : vector<1x32xf32> to vector<8x32xf32>
    %160 = arith.addf %158, %159 : vector<8x32xf32>
    %161 = arith.truncf %160 : vector<8x32xf32> to vector<8x32xbf16>
    %c0_51 = arith.constant 0 : index
    %c0_52 = arith.constant 0 : index
    %162 = vector.load %arg9[%c0_51, %c0_52] : memref<32x128xbf16, #tpu.memory_space<vmem>>, vector<32x128xbf16>
    %cst_53 = arith.constant dense<0.000000e+00> : vector<8x128xf32>
    %163 = tpu.matmul %161, %162, %cst_53 {dimension_numbers = #tpu.dot_dimension_numbers<[1], [0], [0], [1], [0, 0, 1, 1], [], []>} : vector<8x32xbf16>, vector<32x128xbf16>, vector<8x128xf32> -> vector<8x128xf32>
    %c0_54 = arith.constant 0 : index
    %c0_55 = arith.constant 0 : index
    %164 = vector.load %arg10[%c0_54, %c0_55] : memref<1x128xf32, #tpu.memory_space<vmem>>, vector<1x128xf32>
    %165 = vector.broadcast %164 : vector<1x128xf32> to vector<8x128xf32>
    %166 = arith.addf %163, %165 : vector<8x128xf32>
    %cst_56 = arith.constant 0.000000e+00 : f32
    %167 = vector.broadcast %cst_56 : f32 to vector<8x128xf32>
    %168 = arith.cmpf ogt, %166, %167 : vector<8x128xf32>
    %cst_57 = arith.constant 0.00999999977 : f32
    %169 = vector.broadcast %cst_57 : f32 to vector<8x128xf32>
    %170 = arith.mulf %169, %166 : vector<8x128xf32>
    %171 = arith.select %168, %166, %170 : vector<8x128xi1>, vector<8x128xf32>
    %172 = arith.truncf %171 : vector<8x128xf32> to vector<8x128xbf16>
    %c0_58 = arith.constant 0 : index
    %c0_59 = arith.constant 0 : index
    %173 = vector.load %arg11[%c0_58, %c0_59] : memref<128x32xbf16, #tpu.memory_space<vmem>>, vector<128x32xbf16>
    %cst_60 = arith.constant dense<0.000000e+00> : vector<8x32xf32>
    %174 = tpu.matmul %172, %173, %cst_60 {dimension_numbers = #tpu.dot_dimension_numbers<[1], [0], [0], [1], [0, 0, 1, 1], [], []>} : vector<8x128xbf16>, vector<128x32xbf16>, vector<8x32xf32> -> vector<8x32xf32>
    %c0_61 = arith.constant 0 : index
    %c0_62 = arith.constant 0 : index
    %175 = vector.load %arg12[%c0_61, %c0_62] : memref<1x32xf32, #tpu.memory_space<vmem>>, vector<1x32xf32>
    %176 = vector.broadcast %175 : vector<1x32xf32> to vector<8x32xf32>
    %177 = arith.addf %174, %176 : vector<8x32xf32>
    %178 = arith.addf %138, %177 : vector<8x32xf32>
    %179 = vector.shape_cast %178 : vector<8x32xf32> to vector<1x8x32xf32>
    %c0_63 = arith.constant 0 : index
    %c0_64 = arith.constant 0 : index
    %c0_65 = arith.constant 0 : index
    %180 = vector.load %arg13[%c0_63, %c0_64, %c0_65] : memref<1x8x96xf32, #tpu.memory_space<vmem>>, vector<1x8x32xf32>
    tpu.vector_store %arg13[%c0_63, %c0_64, %c0_65], %179 {strides = array<i32>} : memref<1x8x96xf32, #tpu.memory_space<vmem>>, vector<1x8x32xf32>,
    return
  }
  func.func @transform_0(%arg0: i32) -> (i32, i32, i32) {
    %c0_i32 = arith.constant 0 : i32
    %c0_i32_0 = arith.constant 0 : i32
    %c0_i32_1 = arith.constant 0 : i32
    return %arg0, %c0_i32, %c0_i32_0 : i32, i32, i32
  }
  func.func @transform_1(%arg0: i32) -> (i32, i32) {
    %c0_i32 = arith.constant 0 : i32
    %c0_i32_0 = arith.constant 0 : i32
    %c0_i32_1 = arith.constant 0 : i32
    return %c0_i32, %c0_i32_0 : i32, i32
  }
  func.func @transform_2(%arg0: i32) -> (i32, i32) {
    %c0_i32 = arith.constant 0 : i32
    %c0_i32_0 = arith.constant 0 : i32
    %c0_i32_1 = arith.constant 0 : i32
    return %c0_i32, %c0_i32_0 : i32, i32
  }
  func.func @transform_3(%arg0: i32) -> (i32, i32) {
    %c0_i32 = arith.constant 0 : i32
    %c0_i32_0 = arith.constant 0 : i32
    %c0_i32_1 = arith.constant 0 : i32
    return %c0_i32, %c0_i32_0 : i32, i32
  }
  func.func @transform_4(%arg0: i32) -> (i32, i32) {
    %c0_i32 = arith.constant 0 : i32
    %c0_i32_0 = arith.constant 0 : i32
    %c0_i32_1 = arith.constant 0 : i32
    return %c0_i32, %c0_i32_0 : i32, i32
  }
  func.func @transform_5(%arg0: i32) -> (i32, i32) {
    %c0_i32 = arith.constant 0 : i32
    %c0_i32_0 = arith.constant 0 : i32
    %c0_i32_1 = arith.constant 0 : i32
    return %c0_i32, %c0_i32_0 : i32, i32
  }
  func.func @transform_6(%arg0: i32) -> (i32, i32) {
    %c0_i32 = arith.constant 0 : i32
    %c0_i32_0 = arith.constant 0 : i32
    %c0_i32_1 = arith.constant 0 : i32
    return %c0_i32, %c0_i32_0 : i32, i32
  }
  func.func @transform_7(%arg0: i32) -> (i32, i32) {
    %c0_i32 = arith.constant 0 : i32
    %c0_i32_0 = arith.constant 0 : i32
    %c0_i32_1 = arith.constant 0 : i32
    return %c0_i32, %c0_i32_0 : i32, i32
  }
  func.func @transform_8(%arg0: i32) -> (i32, i32) {
    %c0_i32 = arith.constant 0 : i32
    %c0_i32_0 = arith.constant 0 : i32
    %c0_i32_1 = arith.constant 0 : i32
    return %c0_i32, %c0_i32_0 : i32, i32
  }
  func.func @transform_9(%arg0: i32) -> (i32, i32) {
    %c0_i32 = arith.constant 0 : i32
    %c0_i32_0 = arith.constant 0 : i32
    %c0_i32_1 = arith.constant 0 : i32
    return %c0_i32, %c0_i32_0 : i32, i32
  }
  func.func @transform_10(%arg0: i32) -> (i32, i32) {
    %c0_i32 = arith.constant 0 : i32
    %c0_i32_0 = arith.constant 0 : i32
    %c0_i32_1 = arith.constant 0 : i32
    return %c0_i32, %c0_i32_0 : i32, i32
  }
  func.func @transform_11(%arg0: i32) -> (i32, i32) {
    %c0_i32 = arith.constant 0 : i32
    %c0_i32_0 = arith.constant 0 : i32
    %c0_i32_1 = arith.constant 0 : i32
    return %c0_i32, %c0_i32_0 : i32, i32
  }
  func.func @transform_12(%arg0: i32) -> (i32, i32, i32) {
    %c0_i32 = arith.constant 0 : i32
    %c0_i32_0 = arith.constant 0 : i32
    %c0_i32_1 = arith.constant 0 : i32
    return %arg0, %c0_i32, %c0_i32_0 : i32, i32, i32
  }
}

</mosaic_0001>

<llo_original>
// kernel: tpu_custom_call.1
$region0: #{tpu_custom_call.1}
  #allocation0 [shape = 'u32[]', space=smem, size = 0x4, offset = 0x4, fixed_abs, tag = 'smem constant byte address 0x4 - core index']
  #allocation1 [shape = 'u32[72,128]{1,0:T(1,128)}', space=vmem, size = 0x9000, scoped, tag = 'internal scratch']
  %s0 = inlined_call_operand.vmem [shape: f32[2,8,32], index: 0, kind: input, shape index: {}]
  %s1 = inlined_call_operand.vmem [shape: f32[1,32], index: 1, kind: input, shape index: {}]
  %s2 = inlined_call_operand.vmem [shape: f32[1,32], index: 2, kind: input, shape index: {}]
  %s3 = inlined_call_operand.vmem [shape: bf16[32,96], index: 3, kind: input, shape index: {}]
  %s4 = inlined_call_operand.vmem [shape: bf16[32,32], index: 4, kind: input, shape index: {}]
  %s5 = inlined_call_operand.vmem [shape: f32[1,32], index: 5, kind: input, shape index: {}]
  %s6 = inlined_call_operand.vmem [shape: f32[1,32], index: 6, kind: input, shape index: {}]
  %s7 = inlined_call_operand.vmem [shape: f32[1,32], index: 7, kind: input, shape index: {}]
  %s8 = inlined_call_operand.vmem [shape: bf16[32,128], index: 8, kind: input, shape index: {}]
  %s9 = inlined_call_operand.vmem [shape: f32[1,128], index: 9, kind: input, shape index: {}]
  %s10 = inlined_call_operand.vmem [shape: bf16[128,32], index: 10, kind: input, shape index: {}]
  %s11 = inlined_call_operand.vmem [shape: f32[1,32], index: 11, kind: input, shape index: {}]
  %s12 = inlined_call_operand.hbm [shape: f32[2,8,96], index: 12, kind: output, shape index: {}]
  %s13 = sld [smem:[#allocation0]]
  $region81: #{tpu_custom_call.1} parent=0
    _
  %s15 = ssub.s32 1, %s13
  %s16 = scalar_select 0, %s15, %s13
  $region1: #{tpu_custom_call.1} parent=0
    #allocation2 [shape = 'u8[8192]{0}', space=vmem, size = 0x2000, scoped, tag = 'output window, operand 0']
    #allocation3 [shape = 's32[2]{0}', space=sflag, size = 0x8, scoped, tag = 'scoped memory for tpu_custom_call.1']
    %17 = vsyncpa [#allocation3], 0
    %s18 = scalar_lea.sflag [#allocation3], 1
    %19 = vsyncpa %s18, 0
    loop: start=0, step=1, limit=4
    $region2: #{tpu_custom_call.1} parent=1 // loop_pre_header
      _
    $region3: #{tpu_custom_call.1} parent=1 // loop_header
      %s21 = sphi 0, %s25
      %p22 = scmp.ge.s32.totalorder %s21, 4
      %s31 = sphi 0, %s33
      %s34 = sphi 0, %s31
      %s35 = sphi 0, %s34
      %s51 = sphi 0, %s35
      %s55 = sphi 0, %s55
      %s57 = sphi 0, %s55
      %s58 = sphi 0, %s57
      %s72 = sphi 0, %s58
      %s76 = sphi 0, %s76
      %s78 = sphi 0, %s76
      %s79 = sphi 0, %s78
      %s93 = sphi 0, %s79
      %s97 = sphi 0, %s97
      %s99 = sphi 0, %s97
      %s100 = sphi 0, %s99
      %s114 = sphi 0, %s100
      %s118 = sphi 0, %s118
      %s120 = sphi 0, %s118
      %s121 = sphi 0, %s120
      %s135 = sphi 0, %s121
      %s139 = sphi 0, %s139
      %s141 = sphi 0, %s139
      %s142 = sphi 0, %s141
      %s156 = sphi 0, %s142
      %s160 = sphi 0, %s160
      %s162 = sphi 0, %s160
      %s163 = sphi 0, %s162
      %s177 = sphi 0, %s163
      %s181 = sphi 0, %s181
      %s183 = sphi 0, %s181
      %s184 = sphi 0, %s183
      %s198 = sphi 0, %s184
      %s202 = sphi 0, %s202
      %s204 = sphi 0, %s202
      %s205 = sphi 0, %s204
      %s219 = sphi 0, %s205
      %s223 = sphi 0, %s223
      %s225 = sphi 0, %s223
      %s226 = sphi 0, %s225
      %s240 = sphi 0, %s226
      %s244 = sphi 0, %s244
      %s246 = sphi 0, %s244
      %s247 = sphi 0, %s246
      %s261 = sphi 0, %s247
      %s265 = sphi 0, %s265
      %s267 = sphi 0, %s265
      %s268 = sphi 0, %s267
      %s282 = sphi 0, %s268
      %s288 = sphi 0, %s290
      %s291 = sphi 0, %s288
      %s292 = sphi 0, %s291
      %s308 = sphi 0, %s292
    $region4: #{tpu_custom_call.1} parent=1 // loop_header_branch
      %24 = sbr.rel (%p22) target = $region8
    $region5: #{tpu_custom_call.1} parent=1 // loop_body
      %s26 = ssub.s32 %s21, 1
      %s27 = ssub.s32 %s21, 2
      %s28 = sadd.s32 %s21, 1
      %s29 = ssub.s32 %s21, %s28
      %p30 = scmp.eq.s32.totalorder %s29, 0
      %s32 = sadd.s32 %s31, 1
      %s33 = scalar_select %p30, %s31, %s32
      %p36 = pneg %p30
      %p37 = scmp.eq.s32.totalorder %s21, 1
      %p38 = por %p36, %p37
      %p39 = scmp.ne.s32.totalorder %s31, %s34
      %p40 = scmp.eq.s32.totalorder %s21, 0
      %p41 = por %p39, %p40
      %p42 = scmp.ne.s32.totalorder %s31, %s34
      %p43 = scmp.eq.s32.totalorder %s26, 1
      %p44 = por %p42, %p43
      %p45 = scmp.ne.s32.totalorder %s34, %s35
      %p46 = scmp.eq.s32.totalorder %s26, 0
      %p47 = por %p45, %p46
      %p48 = scmp.ne.s32.totalorder %s34, %s35
      %p49 = scmp.eq.s32.totalorder %s27, 1
      %p50 = por %p48, %p49
      %p52 = scmp.ne.s32.totalorder %s35, %s51
      %p53 = scmp.eq.s32.totalorder %s27, 0
      %p54 = por %p52, %p53
      %s56 = sadd.s32 %s55, 1
      %p59 = scmp.eq.s32.totalorder %s21, 1
      %p60 = scmp.ne.s32.totalorder %s55, %s57
      %p61 = scmp.eq.s32.totalorder %s21, 0
      %p62 = por %p60, %p61
      %p63 = scmp.ne.s32.totalorder %s55, %s57
      %p64 = scmp.eq.s32.totalorder %s26, 1
      %p65 = por %p63, %p64
      %p66 = scmp.ne.s32.totalorder %s57, %s58
      %p67 = scmp.eq.s32.totalorder %s26, 0
      %p68 = por %p66, %p67
      %p69 = scmp.ne.s32.totalorder %s57, %s58
      %p70 = scmp.eq.s32.totalorder %s27, 1
      %p71 = por %p69, %p70
      %p73 = scmp.ne.s32.totalorder %s58, %s72
      %p74 = scmp.eq.s32.totalorder %s27, 0
      %p75 = por %p73, %p74
      %s77 = sadd.s32 %s76, 1
      %p80 = scmp.eq.s32.totalorder %s21, 1
      %p81 = scmp.ne.s32.totalorder %s76, %s78
      %p82 = scmp.eq.s32.totalorder %s21, 0
      %p83 = por %p81, %p82
      %p84 = scmp.ne.s32.totalorder %s76, %s78
      %p85 = scmp.eq.s32.totalorder %s26, 1
      %p86 = por %p84, %p85
      %p87 = scmp.ne.s32.totalorder %s78, %s79
      %p88 = scmp.eq.s32.totalorder %s26, 0
      %p89 = por %p87, %p88
      %p90 = scmp.ne.s32.totalorder %s78, %s79
      %p91 = scmp.eq.s32.totalorder %s27, 1
      %p92 = por %p90, %p91
      %p94 = scmp.ne.s32.totalorder %s79, %s93
      %p95 = scmp.eq.s32.totalorder %s27, 0
      %p96 = por %p94, %p95
      %s98 = sadd.s32 %s97, 1
      %p101 = scmp.eq.s32.totalorder %s21, 1
      %p102 = scmp.ne.s32.totalorder %s97, %s99
      %p103 = scmp.eq.s32.totalorder %s21, 0
      %p104 = por %p102, %p103
      %p105 = scmp.ne.s32.totalorder %s97, %s99
      %p106 = scmp.eq.s32.totalorder %s26, 1
      %p107 = por %p105, %p106
      %p108 = scmp.ne.s32.totalorder %s99, %s100
      %p109 = scmp.eq.s32.totalorder %s26, 0
      %p110 = por %p108, %p109
      %p111 = scmp.ne.s32.totalorder %s99, %s100
      %p112 = scmp.eq.s32.totalorder %s27, 1
      %p113 = por %p111, %p112
      %p115 = scmp.ne.s32.totalorder %s100, %s114
      %p116 = scmp.eq.s32.totalorder %s27, 0
      %p117 = por %p115, %p116
      %s119 = sadd.s32 %s118, 1
      %p122 = scmp.eq.s32.totalorder %s21, 1
      %p123 = scmp.ne.s32.totalorder %s118, %s120
      %p124 = scmp.eq.s32.totalorder %s21, 0
      %p125 = por %p123, %p124
      %p126 = scmp.ne.s32.totalorder %s118, %s120
      %p127 = scmp.eq.s32.totalorder %s26, 1
      %p128 = por %p126, %p127
      %p129 = scmp.ne.s32.totalorder %s120, %s121
      %p130 = scmp.eq.s32.totalorder %s26, 0
      %p131 = por %p129, %p130
      %p132 = scmp.ne.s32.totalorder %s120, %s121
      %p133 = scmp.eq.s32.totalorder %s27, 1
      %p134 = por %p132, %p133
      %p136 = scmp.ne.s32.totalorder %s121, %s135
      %p137 = scmp.eq.s32.totalorder %s27, 0
      %p138 = por %p136, %p137
      %s140 = sadd.s32 %s139, 1
      %p143 = scmp.eq.s32.totalorder %s21, 1
      %p144 = scmp.ne.s32.totalorder %s139, %s141
      %p145 = scmp.eq.s32.totalorder %s21, 0
      %p146 = por %p144, %p145
      %p147 = scmp.ne.s32.totalorder %s139, %s141
      %p148 = scmp.eq.s32.totalorder %s26, 1
      %p149 = por %p147, %p148
      %p150 = scmp.ne.s32.totalorder %s141, %s142
      %p151 = scmp.eq.s32.totalorder %s26, 0
      %p152 = por %p150, %p151
      %p153 = scmp.ne.s32.totalorder %s141, %s142
      %p154 = scmp.eq.s32.totalorder %s27, 1
      %p155 = por %p153, %p154
      %p157 = scmp.ne.s32.totalorder %s142, %s156
      %p158 = scmp.eq.s32.totalorder %s27, 0
      %p159 = por %p157, %p158
      %s161 = sadd.s32 %s160, 1
      %p164 = scmp.eq.s32.totalorder %s21, 1
      %p165 = scmp.ne.s32.totalorder %s160, %s162
      %p166 = scmp.eq.s32.totalorder %s21, 0
      %p167 = por %p165, %p166
      %p168 = scmp.ne.s32.totalorder %s160, %s162
      %p169 = scmp.eq.s32.totalorder %s26, 1
      %p170 = por %p168, %p169
      %p171 = scmp.ne.s32.totalorder %s162, %s163
      %p172 = scmp.eq.s32.totalorder %s26, 0
      %p173 = por %p171, %p172
      %p174 = scmp.ne.s32.totalorder %s162, %s163
      %p175 = scmp.eq.s32.totalorder %s27, 1
      %p176 = por %p174, %p175
      %p178 = scmp.ne.s32.totalorder %s163, %s177
      %p179 = scmp.eq.s32.totalorder %s27, 0
      %p180 = por %p178, %p179
      %s182 = sadd.s32 %s181, 1
      %p185 = scmp.eq.s32.totalorder %s21, 1
      %p186 = scmp.ne.s32.totalorder %s181, %s183
      %p187 = scmp.eq.s32.totalorder %s21, 0
      %p188 = por %p186, %p187
      %p189 = scmp.ne.s32.totalorder %s181, %s183
      %p190 = scmp.eq.s32.totalorder %s26, 1
      %p191 = por %p189, %p190
      %p192 = scmp.ne.s32.totalorder %s183, %s184
      %p193 = scmp.eq.s32.totalorder %s26, 0
      %p194 = por %p192, %p193
      %p195 = scmp.ne.s32.totalorder %s183, %s184
      %p196 = scmp.eq.s32.totalorder %s27, 1
      %p197 = por %p195, %p196
      %p199 = scmp.ne.s32.totalorder %s184, %s198
      %p200 = scmp.eq.s32.totalorder %s27, 0
      %p201 = por %p199, %p200
      %s203 = sadd.s32 %s202, 1
      %p206 = scmp.eq.s32.totalorder %s21, 1
      %p207 = scmp.ne.s32.totalorder %s202, %s204
      %p208 = scmp.eq.s32.totalorder %s21, 0
      %p209 = por %p207, %p208
      %p210 = scmp.ne.s32.totalorder %s202, %s204
      %p211 = scmp.eq.s32.totalorder %s26, 1
      %p212 = por %p210, %p211
      %p213 = scmp.ne.s32.totalorder %s204, %s205
      %p214 = scmp.eq.s32.totalorder %s26, 0
      %p215 = por %p213, %p214
      %p216 = scmp.ne.s32.totalorder %s204, %s205
      %p217 = scmp.eq.s32.totalorder %s27, 1
      %p218 = por %p216, %p217
      %p220 = scmp.ne.s32.totalorder %s205, %s219
      %p221 = scmp.eq.s32.totalorder %s27, 0
      %p222 = por %p220, %p221
      %s224 = sadd.s32 %s223, 1
      %p227 = scmp.eq.s32.totalorder %s21, 1
      %p228 = scmp.ne.s32.totalorder %s223, %s225
      %p229 = scmp.eq.s32.totalorder %s21, 0
      %p230 = por %p228, %p229
      %p231 = scmp.ne.s32.totalorder %s223, %s225
      %p232 = scmp.eq.s32.totalorder %s26, 1
      %p233 = por %p231, %p232
      %p234 = scmp.ne.s32.totalorder %s225, %s226
      %p235 = scmp.eq.s32.totalorder %s26, 0
      %p236 = por %p234, %p235
      %p237 = scmp.ne.s32.totalorder %s225, %s226
      %p238 = scmp.eq.s32.totalorder %s27, 1
      %p239 = por %p237, %p238
      %p241 = scmp.ne.s32.totalorder %s226, %s240
      %p242 = scmp.eq.s32.totalorder %s27, 0
      %p243 = por %p241, %p242
      %s245 = sadd.s32 %s244, 1
      %p248 = scmp.eq.s32.totalorder %s21, 1
      %p249 = scmp.ne.s32.totalorder %s244, %s246
      %p250 = scmp.eq.s32.totalorder %s21, 0
      %p251 = por %p249, %p250
      %p252 = scmp.ne.s32.totalorder %s244, %s246
      %p253 = scmp.eq.s32.totalorder %s26, 1
      %p254 = por %p252, %p253
      %p255 = scmp.ne.s32.totalorder %s246, %s247
      %p256 = scmp.eq.s32.totalorder %s26, 0
      %p257 = por %p255, %p256
      %p258 = scmp.ne.s32.totalorder %s246, %s247
      %p259 = scmp.eq.s32.totalorder %s27, 1
      %p260 = por %p258, %p259
      %p262 = scmp.ne.s32.totalorder %s247, %s261
      %p263 = scmp.eq.s32.totalorder %s27, 0
      %p264 = por %p262, %p263
      %s266 = sadd.s32 %s265, 1
      %p269 = scmp.eq.s32.totalorder %s21, 1
      %p270 = scmp.ne.s32.totalorder %s265, %s267
      %p271 = scmp.eq.s32.totalorder %s21, 0
      %p272 = por %p270, %p271
      %p273 = scmp.ne.s32.totalorder %s265, %s267
      %p274 = scmp.eq.s32.totalorder %s26, 1
      %p275 = por %p273, %p274
      %p276 = scmp.ne.s32.totalorder %s267, %s268
      %p277 = scmp.eq.s32.totalorder %s26, 0
      %p278 = por %p276, %p277
      %p279 = scmp.ne.s32.totalorder %s267, %s268
      %p280 = scmp.eq.s32.totalorder %s27, 1
      %p281 = por %p279, %p280
      %p283 = scmp.ne.s32.totalorder %s268, %s282
      %p284 = scmp.eq.s32.totalorder %s27, 0
      %p285 = por %p283, %p284
      %s286 = ssub.s32 %s21, %s28
      %p287 = scmp.eq.s32.totalorder %s286, 0
      %s289 = sadd.s32 %s288, 1
      %s290 = scalar_select %p287, %s288, %s289
      %p293 = pneg %p287
      %p294 = scmp.eq.s32.totalorder %s21, 1
      %p295 = por %p293, %p294
      %p296 = scmp.ne.s32.totalorder %s288, %s291
      %p297 = scmp.eq.s32.totalorder %s21, 0
      %p298 = por %p296, %p297
      %p299 = scmp.ne.s32.totalorder %s288, %s291
      %p300 = scmp.eq.s32.totalorder %s26, 1
      %p301 = por %p299, %p300
      %p302 = scmp.ne.s32.totalorder %s291, %s292
      %p303 = scmp.eq.s32.totalorder %s26, 0
      %p304 = por %p302, %p303
      %p305 = scmp.ne.s32.totalorder %s291, %s292
      %p306 = scmp.eq.s32.totalorder %s27, 1
      %p307 = por %p305, %p306
      %p309 = scmp.ne.s32.totalorder %s292, %s308
      %p310 = scmp.eq.s32.totalorder %s27, 0
      %p311 = por %p309, %p310
      %p312 = scmp.le.s32.totalorder 1, %s21
      %p313 = scmp.lt.s32.totalorder %s21, 3
      %p314 = pnand %p312, %p313
      %p315 = pneg %p314
      // Predicated region
      $region9: #{tpu_custom_call.1} parent=5 // pred_check
        _
      $region10: #{tpu_custom_call.1} parent=5 // pred_check_branch
        %317 = sbr.rel (%p314) target = $region12
      $region11: #{tpu_custom_call.1} parent=5 // pred_region
        %s318 = ssub.s32 %s21, 1
        // Predicated region
        $region13: #{tpu_custom_call.1} parent=11 // pred_check
          %p319 = pneg %p68
        $region14: #{tpu_custom_call.1} parent=11 // pred_check_branch
          %321 = sbr.rel (%p319) target = $region16
        $region15: #{tpu_custom_call.1} parent=11 // pred_region
          _
        $region16: #{tpu_custom_call.1} parent=11 // pred_fallthru
          _
        // Predicated region
        $region17: #{tpu_custom_call.1} parent=11 // pred_check
          %p322 = pneg %p89
        $region18: #{tpu_custom_call.1} parent=11 // pred_check_branch
          %324 = sbr.rel (%p322) target = $region20
        $region19: #{tpu_custom_call.1} parent=11 // pred_region
          _
        $region20: #{tpu_custom_call.1} parent=11 // pred_fallthru
          _
        // Predicated region
        $region21: #{tpu_custom_call.1} parent=11 // pred_check
          %p325 = pneg %p110
        $region22: #{tpu_custom_call.1} parent=11 // pred_check_branch
          %327 = sbr.rel (%p325) target = $region24
        $region23: #{tpu_custom_call.1} parent=11 // pred_region
          _
        $region24: #{tpu_custom_call.1} parent=11 // pred_fallthru
          _
        // Predicated region
        $region25: #{tpu_custom_call.1} parent=11 // pred_check
          %p328 = pneg %p131
        $region26: #{tpu_custom_call.1} parent=11 // pred_check_branch
          %330 = sbr.rel (%p328) target = $region28
        $region27: #{tpu_custom_call.1} parent=11 // pred_region
          _
        $region28: #{tpu_custom_call.1} parent=11 // pred_fallthru
          _
        // Predicated region
        $region29: #{tpu_custom_call.1} parent=11 // pred_check
          %p331 = pneg %p152
        $region30: #{tpu_custom_call.1} parent=11 // pred_check_branch
          %333 = sbr.rel (%p331) target = $region32
        $region31: #{tpu_custom_call.1} parent=11 // pred_region
          _
        $region32: #{tpu_custom_call.1} parent=11 // pred_fallthru
          _
        // Predicated region
        $region33: #{tpu_custom_call.1} parent=11 // pred_check
          %p334 = pneg %p173
        $region34: #{tpu_custom_call.1} parent=11 // pred_check_branch
          %336 = sbr.rel (%p334) target = $region36
        $region35: #{tpu_custom_call.1} parent=11 // pred_region
          _
        $region36: #{tpu_custom_call.1} parent=11 // pred_fallthru
          _
        // Predicated region
        $region37: #{tpu_custom_call.1} parent=11 // pred_check
          %p337 = pneg %p194
        $region38: #{tpu_custom_call.1} parent=11 // pred_check_branch
          %339 = sbr.rel (%p337) target = $region40
        $region39: #{tpu_custom_call.1} parent=11 // pred_region
          _
        $region40: #{tpu_custom_call.1} parent=11 // pred_fallthru
          _
        // Predicated region
        $region41: #{tpu_custom_call.1} parent=11 // pred_check
          %p340 = pneg %p215
        $region42: #{tpu_custom_call.1} parent=11 // pred_check_branch
          %342 = sbr.rel (%p340) target = $region44
        $region43: #{tpu_custom_call.1} parent=11 // pred_region
          _
        $region44: #{tpu_custom_call.1} parent=11 // pred_fallthru
          _
        // Predicated region
        $region45: #{tpu_custom_call.1} parent=11 // pred_check
          %p343 = pneg %p236
        $region46: #{tpu_custom_call.1} parent=11 // pred_check_branch
          %345 = sbr.rel (%p343) target = $region48
        $region47: #{tpu_custom_call.1} parent=11 // pred_region
          _
        $region48: #{tpu_custom_call.1} parent=11 // pred_fallthru
          _
        // Predicated region
        $region49: #{tpu_custom_call.1} parent=11 // pred_check
          %p346 = pneg %p257
        $region50: #{tpu_custom_call.1} parent=11 // pred_check_branch
          %348 = sbr.rel (%p346) target = $region52
        $region51: #{tpu_custom_call.1} parent=11 // pred_region
          _
        $region52: #{tpu_custom_call.1} parent=11 // pred_fallthru
          _
        // Predicated region
        $region53: #{tpu_custom_call.1} parent=11 // pred_check
          %p349 = pneg %p278
        $region54: #{tpu_custom_call.1} parent=11 // pred_check_branch
          %351 = sbr.rel (%p349) target = $region56
        $region55: #{tpu_custom_call.1} parent=11 // pred_region
          _
        $region56: #{tpu_custom_call.1} parent=11 // pred_fallthru
          _
      $region12: #{tpu_custom_call.1} parent=5 // pred_fallthru
        _
      %p352 = scmp.lt.s32.totalorder %s21, 2
      // Predicated region
      $region57: #{tpu_custom_call.1} parent=5 // pred_check
        %p353 = pneg %p352
      $region58: #{tpu_custom_call.1} parent=5 // pred_check_branch
        %355 = sbr.rel (%p353) target = $region60
      $region59: #{tpu_custom_call.1} parent=5 // pred_region
        // Predicated region
        $region61: #{tpu_custom_call.1} parent=59 // pred_check
          %p356 = pneg %p41
        $region62: #{tpu_custom_call.1} parent=59 // pred_check_branch
          %358 = sbr.rel (%p356) target = $region64
        $region63: #{tpu_custom_call.1} parent=59 // pred_region
          %p359 = scmp.lt.s32.totalorder %s21, 1
          %s360 = scalar_select %p359, %s21, 1
          %s361 = smul.addr %s360, 8
          %s362 = scalar_lea.vmem %s0, %s361
        $region64: #{tpu_custom_call.1} parent=59 // pred_fallthru
          _
      $region60: #{tpu_custom_call.1} parent=5 // pred_fallthru
        _
      %p363 = scmp.le.s32.totalorder 1, %s21
      %p364 = scmp.lt.s32.totalorder %s21, 3
      %p365 = pnand %p363, %p364
      %p366 = pneg %p365
      // Predicated region
      $region65: #{tpu_custom_call.1} parent=5 // pred_check
        _
      $region66: #{tpu_custom_call.1} parent=5 // pred_check_branch
        %368 = sbr.rel (%p365) target = $region68
      $region67: #{tpu_custom_call.1} parent=5 // pred_region
        %s369 = ssub.s32 %s21, 1
        %p370 = scmp.lt.s32.totalorder %s26, 1
        %s371 = scalar_select %p370, %s26, 1
        %s372 = smul.addr %s371, 8
        %s373 = scalar_lea.vmem %s0, %s372
        %p374 = pneg %p47
        %p375 = pneg %p44
        %p376 = pneg %p68
        %p377 = pneg %p65
        %p378 = pneg %p89
        %p379 = pneg %p86
        %p380 = pneg %p110
        %p381 = pneg %p107
        %p382 = pneg %p131
        %p383 = pneg %p128
        %p384 = pneg %p152
        %p385 = pneg %p149
        %p386 = pneg %p173
        %p387 = pneg %p170
        %p388 = pneg %p194
        %p389 = pneg %p191
        %p390 = pneg %p215
        %p391 = pneg %p212
        %p392 = pneg %p236
        %p393 = pneg %p233
        %p394 = pneg %p257
        %p395 = pneg %p254
        %p396 = pneg %p278
        %p397 = pneg %p275
        %p398 = pneg %p304
        %p399 = pneg %p301
        %s400 = sand.u32 %s291, 1
        %s401 = scalar_lea.sflag [#allocation3], %s400
        %s402 = sand.u32 %s291, 1
        %s403 = smul.addr %s402, 8
        %s404 = scalar_lea.vmem [#allocation2], %s403
        %p405 = scmp.lt.s32.totalorder %s26, 1
        %s406 = scalar_select %p405, %s26, 1
        %s407 = smul.addr %s406, 8
        %s408 = scalar_lea.vmem %s0, %s407
        %v410 = vld [vmem:[%s408] sm:$0xff]
        %v411 = vld [vmem:[%s1] sm:$0x1]
        %v412 = vld [vmem:[%s2] sm:$0x1]
        %vm413 = vcmask 261120
        %v414 = vsel %vm413, %v410, 0.0
        %415 = vadd.xlane.f32.xlu0 %v414
        %v416 = vpop.xlane.xlu0 %415
        %v417 = vrcp.pop 32.0
        %v418 = vmul.f32 32.0, %v417
        %v419 = vsub.f32 1.0, %v418
        %v420 = vmul.f32 %v417, %v419
        %v421 = vadd.f32 %v417, %v420
        %vm422 = vweird.f32 %v417
        %v423 = vsel %vm422, %v417, %v421
        %v424 = vmul.f32 %v416, %v423
        %v425 = vsub.f32 %v410, %v424
        %v426 = vmul.f32 %v425, %v425
        %v427 = vsel %vm413, %v426, 0.0
        %428 = vadd.xlane.f32.xlu0 %v427
        %v429 = vpop.xlane.xlu0 %428
        %v430 = vmul.f32 %v429, %v423
        %v431 = vadd.f32 %v430, 1e-05
        %v432 = vrsqrt.pop %v431
        %v433 = vmul.f32 %v432, %v431
        %v434 = vmul.f32 %v433, %v432
        %v435 = vmul.f32 0.5, %v434
        %v436 = vsub.f32 1.5, %v435
        %v437 = vmul.f32 %v432, %v436
        %vm438 = vweird.f32 %v431
        %vm439 = vweird.f32 %v432
        %vm440 = vmor %vm438, %vm439
        %v441 = vsel %vm440, %v432, %v437
        %v442 = vmul.f32 %v425, %v441
        %v444 = vperm.slane %v411, 0
        %v446 = vmul.f32 %v442, %v444
        %v448 = vperm.slane %v412, 0
        %v450 = vadd.f32 %v446, %v448
        %v451 = vpack.c.bf16 %v450, %v450
        %v452 = vld [vmem:[%s3] sm:$0xf]
        %v453 = vld [vmem:[%s3 + $0x4] sm:$0xf]
        %v454 = vld [vmem:[%s3 + $0x8] sm:$0xf]
        %v455 = vld [vmem:[%s3 + $0xc] sm:$0xf]
        %v460 = vunpack.c.l.b16 %v452
        %v461 = vunpack.c.l.b16 %v453
        %v462 = vunpack.c.l.b16 %v454
        %v463 = vunpack.c.l.b16 %v455
        %v464 = vpack.c.b16 %v461, %v460
        %v465 = vpack.c.b16 %v463, %v462
        %v469 = vsel %vm413, %v451, 0
        %471 = vmatpush.bf16.msra.mxu0 0
        %472 = vmatpush.bf16.msra.mxu0 0
        %473 = vmatpush.bf16.msra.mxu0 0
        %474 = vmatpush.bf16.msra.mxu0 0
        %475 = vmatpush.bf16.msra.mxu0 0
        %476 = vmatpush.bf16.msra.mxu0 0
        %477 = vmatpush.bf16.msra.mxu0 %v465
        %478 = vmatpush.bf16.msra.mxu0 %v464
        %479 = vmatmul.bf16.gmra.mxu0 %v469
        %v480 = vpop.f32.mrf.mxu0
        %v481 = vadd.f32 0.0, %v480
        %v482 = vpop.f32.mrf.mxu0
        %483 = vdwg.mxu0
        %vm484 = vcmask 523520
        %485 = vst.msk [vmem:[%s404] sm:$0xff] %vm484, %v481
        %vm486 = vcmask 785920
        %487 = vst.msk [vmem:[%s404] sm:$0xff] %vm486, %v481
        %v488 = vld [vmem:[%s4] sm:$0xf]
        %v489 = vld [vmem:[%s4 + $0x4] sm:$0xf]
        %v490 = vld [vmem:[%s4 + $0x8] sm:$0xf]
        %v491 = vld [vmem:[%s4 + $0xc] sm:$0xf]
        %v492 = vpack.c.bf16 %v481, %v481
        %v494 = vunpack.c.l.b16 %v492
        %v495 = vpack.c.b16 %v494, %v494
        %496 = vrot.lane.b32.xlu0 %v495, 96
        %v497 = vpop.permute.xlu0 %496
        %vm498 = vcmask 64512
        %v500 = vsel %vm498, %v492, 0
        %v503 = vsel %vm498, %v497, 0
        %505 = vmatpush.bf16.xpose.msra.mxu0 0
        %506 = vmatpush.bf16.xpose.msra.mxu0 0
        %507 = vmatpush.bf16.xpose.msra.mxu0 0
        %508 = vmatpush.bf16.xpose.msra.mxu0 0
        %509 = vmatpush.bf16.xpose.msra.mxu0 0
        %510 = vmatpush.bf16.xpose.msra.mxu0 0
        %511 = vmatpush.bf16.xpose.msra.mxu0 0
        %512 = vmatpush.bf16.xpose.msra.mxu0 %v503
        %513 = vmatmul.bf16.gmra.mxu0 %v500
        %v514 = vpop.f32.mrf.mxu0
        %v515 = vadd.f32 0.0, %v514
        %v516 = vpop.f32.mrf.mxu0
        %517 = vdwg.mxu0
        %v518 = vsel %vm498, %v515, -inf
        %v519 = vrot.slane %v518, 4
        %v520 = vmax.f32 %v518, %v519
        %v521 = vrot.slane %v520, 2
        %v522 = vmax.f32 %v520, %v521
        %v523 = vrot.slane %v522, 1
        %v524 = vmax.f32 %v522, %v523
        %v525 = vsub.f32 %v515, %v524
        %v526 = vmul.f32 %v525, 1.442695
        %v527 = vpow.pop %v526
        %v528 = vsel %vm498, %v527, 0.0
        %v529 = vrot.slane %v528, 4
        %v530 = vadd.f32 %v528, %v529
        %v531 = vrot.slane %v530, 2
        %v532 = vadd.f32 %v530, %v531
        %v533 = vrot.slane %v532, 1
        %v534 = vadd.f32 %v532, %v533
        %v535 = vrcp.pop %v534
        %v536 = vmul.f32 %v527, %v535
        %v537 = vpack.c.bf16 %v536, %v536
        %538 = vrot.lane.b32.xlu0 %v495, 64
        %v539 = vpop.permute.xlu0 %538
        %v541 = vsel %vm498, %v537, 0
        %vm543 = vcmask 1043456
        %v545 = vsel %vm543, %v539, 0
        %547 = vmatpush.bf16.msra.mxu0 0
        %548 = vmatpush.bf16.msra.mxu0 0
        %549 = vmatpush.bf16.msra.mxu0 0
        %550 = vmatpush.bf16.msra.mxu0 0
        %551 = vmatpush.bf16.msra.mxu0 0
        %552 = vmatpush.bf16.msra.mxu0 0
        %553 = vmatpush.bf16.msra.mxu0 0
        %554 = vmatpush.bf16.msra.mxu0 %v545
        %555 = vmatmul.bf16.gmra.mxu0 %v541
        %v556 = vpop.f32.mrf.mxu0
        %v557 = vadd.f32 0.0, %v556
        %v558 = vpop.f32.mrf.mxu0
        %559 = vdwg.mxu0
        %v560 = vpack.c.bf16 %v557, %v557
        %561 = vrot.lane.b32.xlu0 %v495, 120
        %v562 = vpop.permute.xlu0 %561
        %563 = vrot.lane.b32.xlu0 %v495, 88
        %v564 = vpop.permute.xlu0 %563
        %v566 = vsel %vm498, %v562, 0
        %v569 = vsel %vm498, %v564, 0
        %571 = vmatpush.bf16.xpose.msra.mxu0 0
        %572 = vmatpush.bf16.xpose.msra.mxu0 0
        %573 = vmatpush.bf16.xpose.msra.mxu0 0
        %574 = vmatpush.bf16.xpose.msra.mxu0 0
        %575 = vmatpush.bf16.xpose.msra.mxu0 0
        %576 = vmatpush.bf16.xpose.msra.mxu0 0
        %577 = vmatpush.bf16.xpose.msra.mxu0 0
        %578 = vmatpush.bf16.xpose.msra.mxu0 %v569
        %579 = vmatmul.bf16.gmra.mxu0 %v566
        %v580 = vpop.f32.mrf.mxu0
        %v581 = vadd.f32 0.0, %v580
        %v582 = vpop.f32.mrf.mxu0
        %583 = vdwg.mxu0
        %v584 = vsel %vm498, %v581, -inf
        %v585 = vrot.slane %v584, 4
        %v586 = vmax.f32 %v584, %v585
        %v587 = vrot.slane %v586, 2
        %v588 = vmax.f32 %v586, %v587
        %v589 = vrot.slane %v588, 1
        %v590 = vmax.f32 %v588, %v589
        %v591 = vsub.f32 %v581, %v590
        %v592 = vmul.f32 %v591, 1.442695
        %v593 = vpow.pop %v592
        %v594 = vsel %vm498, %v593, 0.0
        %v595 = vrot.slane %v594, 4
        %v596 = vadd.f32 %v594, %v595
        %v597 = vrot.slane %v596, 2
        %v598 = vadd.f32 %v596, %v597
        %v599 = vrot.slane %v598, 1
        %v600 = vadd.f32 %v598, %v599
        %v601 = vrcp.pop %v600
        %v602 = vmul.f32 %v593, %v601
        %v603 = vpack.c.bf16 %v602, %v602
        %604 = vrot.lane.b32.xlu0 %v495, 56
        %v605 = vpop.permute.xlu0 %604
        %v607 = vsel %vm498, %v603, 0
        %v610 = vsel %vm543, %v605, 0
        %612 = vmatpush.bf16.msra.mxu0 0
        %613 = vmatpush.bf16.msra.mxu0 0
        %614 = vmatpush.bf16.msra.mxu0 0
        %615 = vmatpush.bf16.msra.mxu0 0
        %616 = vmatpush.bf16.msra.mxu0 0
        %617 = vmatpush.bf16.msra.mxu0 0
        %618 = vmatpush.bf16.msra.mxu0 0
        %619 = vmatpush.bf16.msra.mxu0 %v610
        %620 = vmatmul.bf16.gmra.mxu0 %v607
        %v621 = vpop.f32.mrf.mxu0
        %v622 = vadd.f32 0.0, %v621
        %v623 = vpop.f32.mrf.mxu0
        %624 = vdwg.mxu0
        %v625 = vpack.c.bf16 %v622, %v622
        %v627 = vsel %vm498, %v625, 0
        %v630 = vsel %vm543, %v489, 0
        %632 = vmatpush.bf16.msra.mxu0 0
        %633 = vmatpush.bf16.msra.mxu0 0
        %634 = vmatpush.bf16.msra.mxu0 0
        %635 = vmatpush.bf16.msra.mxu0 0
        %636 = vmatpush.bf16.msra.mxu0 0
        %637 = vmatpush.bf16.msra.mxu0 0
        %638 = vmatpush.bf16.msra.mxu0 0
        %639 = vmatpush.bf16.msra.mxu0 %v630
        %640 = vmatmul.bf16.gmra.mxu0 %v627
        %v641 = vpop.f32.mrf.mxu0
        %v642 = vadd.f32 0.0, %v641
        %v643 = vpop.f32.mrf.mxu0
        %644 = vdwg.mxu0
        %v646 = vsel %vm498, %v560, 0
        %v649 = vsel %vm543, %v488, 0
        %651 = vmatpush.bf16.msra.mxu0 0
        %652 = vmatpush.bf16.msra.mxu0 0
        %653 = vmatpush.bf16.msra.mxu0 0
        %654 = vmatpush.bf16.msra.mxu0 0
        %655 = vmatpush.bf16.msra.mxu0 0
        %656 = vmatpush.bf16.msra.mxu0 0
        %657 = vmatpush.bf16.msra.mxu0 0
        %658 = vmatpush.bf16.msra.mxu0 %v649
        %659 = vmatmul.bf16.gmra.mxu0 %v646
        %v660 = vpop.f32.mrf.mxu0
        %v661 = vadd.f32 %v642, %v660
        %v662 = vpop.f32.mrf.mxu0
        %663 = vdwg.mxu0
        %664 = vrot.lane.b32.xlu0 %v495, 112
        %v665 = vpop.permute.xlu0 %664
        %666 = vrot.lane.b32.xlu0 %v495, 80
        %v667 = vpop.permute.xlu0 %666
        %v669 = vsel %vm498, %v665, 0
        %v672 = vsel %vm498, %v667, 0
        %674 = vmatpush.bf16.xpose.msra.mxu0 0
        %675 = vmatpush.bf16.xpose.msra.mxu0 0
        %676 = vmatpush.bf16.xpose.msra.mxu0 0
        %677 = vmatpush.bf16.xpose.msra.mxu0 0
        %678 = vmatpush.bf16.xpose.msra.mxu0 0
        %679 = vmatpush.bf16.xpose.msra.mxu0 0
        %680 = vmatpush.bf16.xpose.msra.mxu0 0
        %681 = vmatpush.bf16.xpose.msra.mxu0 %v672
        %682 = vmatmul.bf16.gmra.mxu0 %v669
        %v683 = vpop.f32.mrf.mxu0
        %v684 = vadd.f32 0.0, %v683
        %v685 = vpop.f32.mrf.mxu0
        %686 = vdwg.mxu0
        %v687 = vsel %vm498, %v684, -inf
        %v688 = vrot.slane %v687, 4
        %v689 = vmax.f32 %v687, %v688
        %v690 = vrot.slane %v689, 2
        %v691 = vmax.f32 %v689, %v690
        %v692 = vrot.slane %v691, 1
        %v693 = vmax.f32 %v691, %v692
        %v694 = vsub.f32 %v684, %v693
        %v695 = vmul.f32 %v694, 1.442695
        %v696 = vpow.pop %v695
        %v697 = vsel %vm498, %v696, 0.0
        %v698 = vrot.slane %v697, 4
        %v699 = vadd.f32 %v697, %v698
        %v700 = vrot.slane %v699, 2
        %v701 = vadd.f32 %v699, %v700
        %v702 = vrot.slane %v701, 1
        %v703 = vadd.f32 %v701, %v702
        %v704 = vrcp.pop %v703
        %v705 = vmul.f32 %v696, %v704
        %v706 = vpack.c.bf16 %v705, %v705
        %707 = vrot.lane.b32.xlu0 %v495, 48
        %v708 = vpop.permute.xlu0 %707
        %v710 = vsel %vm498, %v706, 0
        %v713 = vsel %vm543, %v708, 0
        %715 = vmatpush.bf16.msra.mxu0 0
        %716 = vmatpush.bf16.msra.mxu0 0
        %717 = vmatpush.bf16.msra.mxu0 0
        %718 = vmatpush.bf16.msra.mxu0 0
        %719 = vmatpush.bf16.msra.mxu0 0
        %720 = vmatpush.bf16.msra.mxu0 0
        %721 = vmatpush.bf16.msra.mxu0 0
        %722 = vmatpush.bf16.msra.mxu0 %v713
        %723 = vmatmul.bf16.gmra.mxu0 %v710
        %v724 = vpop.f32.mrf.mxu0
        %v725 = vadd.f32 0.0, %v724
        %v726 = vpop.f32.mrf.mxu0
        %727 = vdwg.mxu0
        %v728 = vpack.c.bf16 %v725, %v725
        %v730 = vsel %vm498, %v728, 0
        %v733 = vsel %vm543, %v490, 0
        %735 = vmatpush.bf16.msra.mxu0 0
        %736 = vmatpush.bf16.msra.mxu0 0
        %737 = vmatpush.bf16.msra.mxu0 0
        %738 = vmatpush.bf16.msra.mxu0 0
        %739 = vmatpush.bf16.msra.mxu0 0
        %740 = vmatpush.bf16.msra.mxu0 0
        %741 = vmatpush.bf16.msra.mxu0 0
        %742 = vmatpush.bf16.msra.mxu0 %v733
        %743 = vmatmul.bf16.gmra.mxu0 %v730
        %v744 = vpop.f32.mrf.mxu0
        %v745 = vadd.f32 0.0, %v744
        %v746 = vpop.f32.mrf.mxu0
        %747 = vdwg.mxu0
        %v748 = vadd.f32 %v661, %v745
        %749 = vrot.lane.b32.xlu0 %v495, 104
        %v750 = vpop.permute.xlu0 %749
        %751 = vrot.lane.b32.xlu0 %v495, 72
        %v752 = vpop.permute.xlu0 %751
        %v754 = vsel %vm498, %v750, 0
        %v757 = vsel %vm498, %v752, 0
        %759 = vmatpush.bf16.xpose.msra.mxu0 0
        %760 = vmatpush.bf16.xpose.msra.mxu0 0
        %761 = vmatpush.bf16.xpose.msra.mxu0 0
        %762 = vmatpush.bf16.xpose.msra.mxu0 0
        %763 = vmatpush.bf16.xpose.msra.mxu0 0
        %764 = vmatpush.bf16.xpose.msra.mxu0 0
        %765 = vmatpush.bf16.xpose.msra.mxu0 0
        %766 = vmatpush.bf16.xpose.msra.mxu0 %v757
        %767 = vmatmul.bf16.gmra.mxu0 %v754
        %v768 = vpop.f32.mrf.mxu0
        %v769 = vadd.f32 0.0, %v768
        %v770 = vpop.f32.mrf.mxu0
        %771 = vdwg.mxu0
        %v772 = vsel %vm498, %v769, -inf
        %v773 = vrot.slane %v772, 4
        %v774 = vmax.f32 %v772, %v773
        %v775 = vrot.slane %v774, 2
        %v776 = vmax.f32 %v774, %v775
        %v777 = vrot.slane %v776, 1
        %v778 = vmax.f32 %v776, %v777
        %v779 = vsub.f32 %v769, %v778
        %v780 = vmul.f32 %v779, 1.442695
        %v781 = vpow.pop %v780
        %v782 = vsel %vm498, %v781, 0.0
        %v783 = vrot.slane %v782, 4
        %v784 = vadd.f32 %v782, %v783
        %v785 = vrot.slane %v784, 2
        %v786 = vadd.f32 %v784, %v785
        %v787 = vrot.slane %v786, 1
        %v788 = vadd.f32 %v786, %v787
        %v789 = vrcp.pop %v788
        %v790 = vmul.f32 %v781, %v789
        %v791 = vpack.c.bf16 %v790, %v790
        %792 = vrot.lane.b32.xlu0 %v495, 40
        %v793 = vpop.permute.xlu0 %792
        %v795 = vsel %vm498, %v791, 0
        %v798 = vsel %vm543, %v793, 0
        %800 = vmatpush.bf16.msra.mxu0 0
        %801 = vmatpush.bf16.msra.mxu0 0
        %802 = vmatpush.bf16.msra.mxu0 0
        %803 = vmatpush.bf16.msra.mxu0 0
        %804 = vmatpush.bf16.msra.mxu0 0
        %805 = vmatpush.bf16.msra.mxu0 0
        %806 = vmatpush.bf16.msra.mxu0 0
        %807 = vmatpush.bf16.msra.mxu0 %v798
        %808 = vmatmul.bf16.gmra.mxu0 %v795
        %v809 = vpop.f32.mrf.mxu0
        %v810 = vadd.f32 0.0, %v809
        %v811 = vpop.f32.mrf.mxu0
        %812 = vdwg.mxu0
        %v813 = vpack.c.bf16 %v810, %v810
        %v815 = vsel %vm498, %v813, 0
        %v818 = vsel %vm543, %v491, 0
        %820 = vmatpush.bf16.msra.mxu0 0
        %821 = vmatpush.bf16.msra.mxu0 0
        %822 = vmatpush.bf16.msra.mxu0 0
        %823 = vmatpush.bf16.msra.mxu0 0
        %824 = vmatpush.bf16.msra.mxu0 0
        %825 = vmatpush.bf16.msra.mxu0 0
        %826 = vmatpush.bf16.msra.mxu0 0
        %827 = vmatpush.bf16.msra.mxu0 %v818
        %828 = vmatmul.bf16.gmra.mxu0 %v815
        %v829 = vpop.f32.mrf.mxu0
        %v830 = vadd.f32 0.0, %v829
        %v831 = vpop.f32.mrf.mxu0
        %832 = vdwg.mxu0
        %v833 = vadd.f32 %v748, %v830
        %v834 = vadd.f32 %v410, %v833
        %v835 = vld [vmem:[%s5] sm:$0x1]
        %v837 = vperm.slane %v835, 0
        %v839 = vadd.f32 %v834, %v837
        %v840 = vld [vmem:[%s6] sm:$0x1]
        %v841 = vld [vmem:[%s7] sm:$0x1]
        %v842 = vsel %vm413, %v839, 0.0
        %843 = vadd.xlane.f32.xlu0 %v842
        %v844 = vpop.xlane.xlu0 %843
        %v845 = vmul.f32 %v844, %v423
        %v846 = vsub.f32 %v839, %v845
        %v847 = vmul.f32 %v846, %v846
        %v848 = vsel %vm413, %v847, 0.0
        %849 = vadd.xlane.f32.xlu0 %v848
        %v850 = vpop.xlane.xlu0 %849
        %v851 = vmul.f32 %v850, %v423
        %v852 = vadd.f32 %v851, 1e-05
        %v853 = vrsqrt.pop %v852
        %v854 = vmul.f32 %v853, %v852
        %v855 = vmul.f32 %v854, %v853
        %v856 = vmul.f32 0.5, %v855
        %v857 = vsub.f32 1.5, %v856
        %v858 = vmul.f32 %v853, %v857
        %vm859 = vweird.f32 %v852
        %vm860 = vweird.f32 %v853
        %vm861 = vmor %vm859, %vm860
        %v862 = vsel %vm861, %v853, %v858
        %v863 = vmul.f32 %v846, %v862
        %v865 = vperm.slane %v840, 0
        %v867 = vmul.f32 %v863, %v865
        %v869 = vperm.slane %v841, 0
        %v871 = vadd.f32 %v867, %v869
        %v872 = vpack.c.bf16 %v871, %v871
        %v873 = vld [vmem:[%s8] sm:$0xf]
        %v874 = vld [vmem:[%s8 + $0x4] sm:$0xf]
        %v875 = vld [vmem:[%s8 + $0x8] sm:$0xf]
        %v876 = vld [vmem:[%s8 + $0xc] sm:$0xf]
        %v877 = vld [vmem:[%s9] sm:$0x1]
        %v879 = vperm.slane %v877, 0
        %v885 = vunpack.c.l.b16 %v873
        %v886 = vunpack.c.l.b16 %v874
        %v887 = vunpack.c.l.b16 %v875
        %v888 = vunpack.c.l.b16 %v876
        %v889 = vpack.c.b16 %v886, %v885
        %v890 = vpack.c.b16 %v888, %v887
        %v894 = vsel %vm413, %v872, 0
        %896 = vmatpush.bf16.msra.mxu0 0
        %897 = vmatpush.bf16.msra.mxu0 0
        %898 = vmatpush.bf16.msra.mxu0 0
        %899 = vmatpush.bf16.msra.mxu0 0
        %900 = vmatpush.bf16.msra.mxu0 0
        %901 = vmatpush.bf16.msra.mxu0 0
        %902 = vmatpush.bf16.msra.mxu0 %v890
        %903 = vmatpush.bf16.msra.mxu0 %v889
        %904 = vmatmul.bf16.gmra.mxu0 %v894
        %v905 = vpop.f32.mrf.mxu0
        %v906 = vadd.f32 %v879, %v905
        %v907 = vpop.f32.mrf.mxu0
        %908 = vdwg.mxu0
        %vm909 = vcmp.gt.f32.partialorder %v906, 0.0
        %v910 = vmul.f32 %v906, 0.01
        %v911 = vsel %vm909, %v906, %v910
        %v912 = vpack.c.bf16 %v911, %v911
        %v913 = vld [vmem:[%s10] sm:$0xf]
        %v914 = vld [vmem:[%s10 + $0x4] sm:$0xf]
        %v915 = vld [vmem:[%s10 + $0x8] sm:$0xf]
        %v916 = vld [vmem:[%s10 + $0xc] sm:$0xf]
        %v917 = vld [vmem:[%s10 + $0x10] sm:$0xf]
        %v918 = vld [vmem:[%s10 + $0x14] sm:$0xf]
        %v919 = vld [vmem:[%s10 + $0x18] sm:$0xf]
        %v920 = vld [vmem:[%s10 + $0x1c] sm:$0xf]
        %v921 = vld [vmem:[%s10 + $0x20] sm:$0xf]
        %v922 = vld [vmem:[%s10 + $0x24] sm:$0xf]
        %v923 = vld [vmem:[%s10 + $0x28] sm:$0xf]
        %v924 = vld [vmem:[%s10 + $0x2c] sm:$0xf]
        %v925 = vld [vmem:[%s10 + $0x30] sm:$0xf]
        %v926 = vld [vmem:[%s10 + $0x34] sm:$0xf]
        %v927 = vld [vmem:[%s10 + $0x38] sm:$0xf]
        %v928 = vld [vmem:[%s10 + $0x3c] sm:$0xf]
        %v929 = vld [vmem:[%s11] sm:$0x1]
        %v931 = vperm.slane %v929, 0
        %v949 = vunpack.c.l.b16 %v913
        %v950 = vunpack.c.l.b16 %v914
        %v951 = vunpack.c.l.b16 %v915
        %v952 = vunpack.c.l.b16 %v916
        %v953 = vunpack.c.l.b16 %v917
        %v954 = vunpack.c.l.b16 %v918
        %v955 = vunpack.c.l.b16 %v919
        %v956 = vunpack.c.l.b16 %v920
        %v957 = vunpack.c.l.b16 %v921
        %v958 = vunpack.c.l.b16 %v922
        %v959 = vunpack.c.l.b16 %v923
        %v960 = vunpack.c.l.b16 %v924
        %v961 = vunpack.c.l.b16 %v925
        %v962 = vunpack.c.l.b16 %v926
        %v963 = vunpack.c.l.b16 %v927
        %v964 = vunpack.c.l.b16 %v928
        %v965 = vpack.c.b16 %v950, %v949
        %v966 = vpack.c.b16 %v952, %v951
        %v967 = vpack.c.b16 %v954, %v953
        %v968 = vpack.c.b16 %v956, %v955
        %v969 = vpack.c.b16 %v958, %v957
        %v970 = vpack.c.b16 %v960, %v959
        %v971 = vpack.c.b16 %v962, %v961
        %v972 = vpack.c.b16 %v964, %v963
        %981 = vmatpush.bf16.msra.mxu0 %v972
        %982 = vmatpush.bf16.msra.mxu0 %v971
        %983 = vmatpush.bf16.msra.mxu0 %v970
        %984 = vmatpush.bf16.msra.mxu0 %v969
        %985 = vmatpush.bf16.msra.mxu0 %v968
        %986 = vmatpush.bf16.msra.mxu0 %v967
        %987 = vmatpush.bf16.msra.mxu0 %v966
        %988 = vmatpush.bf16.msra.mxu0 %v965
        %989 = vmatmul.bf16.gmra.mxu0 %v912
        %v990 = vpop.f32.mrf.mxu0
        %v991 = vadd.f32 %v931, %v990
        %v992 = vpop.f32.mrf.mxu0
        %993 = vdwg.mxu0
        %v994 = vadd.f32 %v839, %v991
        %995 = vst.msk [vmem:[%s404] sm:$0xff] %vm413, %v994
        %s996 = sand.u32 %s291, 1
        %s997 = scalar_lea.sflag [#allocation3], %s996
        %s998 = sand.u32 %s291, 1
        %s999 = smul.addr %s998, 8
        %s1000 = scalar_lea.vmem [#allocation2], %s999
        // Predicated region
        $region69: #{tpu_custom_call.1} parent=67 // pred_check
          %p1001 = pneg %p301
        $region70: #{tpu_custom_call.1} parent=67 // pred_check_branch
          %1003 = sbr.rel (%p1001) target = $region72
        $region71: #{tpu_custom_call.1} parent=67 // pred_region
          %1005 = vsyncadd %s997, 0
          %s1006 = smul.addr %s26, 8
          %s1007 = scalar_lea.hbm %s12, %s1006
          %s1009 = sshll.u32 %s1000, 4
          %s1010 = int_to_ptr.vmem [resolvable:$true] %s1009
          %s1011 = sshll.u32 %s1007, 4
          %s1012 = int_to_ptr.hbm [resolvable:$true] %s1011
          %1014 = dma.vmem_to_hbm [thread:$0]  %s1010, 128, %s1012, %s997
        $region72: #{tpu_custom_call.1} parent=67 // pred_fallthru
          _
      $region68: #{tpu_custom_call.1} parent=5 // pred_fallthru
        _
      %p1015 = scmp.le.s32.totalorder 2, %s21
      // Predicated region
      $region73: #{tpu_custom_call.1} parent=5 // pred_check
        %p1016 = pneg %p1015
      $region74: #{tpu_custom_call.1} parent=5 // pred_check_branch
        %1018 = sbr.rel (%p1016) target = $region76
      $region75: #{tpu_custom_call.1} parent=5 // pred_region
        %s1019 = ssub.s32 %s21, 2
        // Predicated region
        $region77: #{tpu_custom_call.1} parent=75 // pred_check
          %p1020 = pneg %p307
        $region78: #{tpu_custom_call.1} parent=75 // pred_check_branch
          %1022 = sbr.rel (%p1020) target = $region80
        $region79: #{tpu_custom_call.1} parent=75 // pred_region
          %s1023 = sand.u32 %s292, 1
          %s1024 = scalar_lea.sflag [#allocation3], %s1023
          %s1025 = sand.u32 %s292, 1
          %s1026 = smul.addr %s1025, 8
          %s1027 = scalar_lea.vmem [#allocation2], %s1026
          %1029 = dma.done %s1024, 128
        $region80: #{tpu_custom_call.1} parent=75 // pred_fallthru
          _
      $region76: #{tpu_custom_call.1} parent=5 // pred_fallthru
        _
    $region6: #{tpu_custom_call.1} parent=1 // loop_footer
      %s25 = sadd.s32 1, %s21
    $region7: #{tpu_custom_call.1} parent=1 // loop_footer_branch
      %20 = sbr.rel target = $region3
    $region8: #{tpu_custom_call.1} parent=1 // loop_exit
      _
    %1030 = vsyncpa [#allocation3], 1
    %s1031 = scalar_lea.sflag [#allocation3], 1
    %1032 = vsyncpa %s1031, 1

// kernel: tpu_custom_call.1
$region0: #{tpu_custom_call.1}
  #allocation0 [shape = 'u32[]', space=smem, size = 0x4, offset = 0x4, fixed_abs, tag = 'smem constant byte address 0x4 - core index']
  #allocation1 [shape = 'u32[72,128]{1,0:T(1,128)}', space=vmem, size = 0x9000, scoped, tag = 'internal scratch']
  %s0 = inlined_call_operand.vmem [shape: f32[2,8,32], index: 0, kind: input, shape index: {}]
  %s1 = inlined_call_operand.vmem [shape: f32[1,32], index: 1, kind: input, shape index: {}]
  %s2 = inlined_call_operand.vmem [shape: f32[1,32], index: 2, kind: input, shape index: {}]
  %s3 = inlined_call_operand.vmem [shape: bf16[32,96], index: 3, kind: input, shape index: {}]
  %s4 = inlined_call_operand.vmem [shape: bf16[32,32], index: 4, kind: input, shape index: {}]
  %s5 = inlined_call_operand.vmem [shape: f32[1,32], index: 5, kind: input, shape index: {}]
  %s6 = inlined_call_operand.vmem [shape: f32[1,32], index: 6, kind: input, shape index: {}]
  %s7 = inlined_call_operand.vmem [shape: f32[1,32], index: 7, kind: input, shape index: {}]
  %s8 = inlined_call_operand.vmem [shape: bf16[32,128], index: 8, kind: input, shape index: {}]
  %s9 = inlined_call_operand.vmem [shape: f32[1,128], index: 9, kind: input, shape index: {}]
  %s10 = inlined_call_operand.vmem [shape: bf16[128,32], index: 10, kind: input, shape index: {}]
  %s11 = inlined_call_operand.vmem [shape: f32[1,32], index: 11, kind: input, shape index: {}]
  %s12 = inlined_call_operand.hbm [shape: f32[2,8,96], index: 12, kind: output, shape index: {}]
  %s13 = sld [smem:[#allocation0]]
  $region81: #{tpu_custom_call.1} parent=0
    _
  %s15 = ssub.s32 1, %s13
  %s16 = scalar_select 0, %s15, %s13
  $region1: #{tpu_custom_call.1} parent=0
    #allocation2 [shape = 'u8[8192]{0}', space=vmem, size = 0x2000, scoped, tag = 'output window, operand 0']
    #allocation3 [shape = 's32[2]{0}', space=sflag, size = 0x8, scoped, tag = 'scoped memory for tpu_custom_call.1']
    %17 = vsyncpa [#allocation3], 0
    %s18 = scalar_lea.sflag [#allocation3], 1
    %19 = vsyncpa %s18, 0
    loop: start=0, step=1, limit=4
    $region2: #{tpu_custom_call.1} parent=1 // loop_pre_header
      _
    $region3: #{tpu_custom_call.1} parent=1 // loop_header
      %s21 = sphi 0, %s25
      %p22 = scmp.ge.s32.totalorder %s21, 4
      %s31 = sphi 0, %s33
      %s34 = sphi 0, %s31
      %s35 = sphi 0, %s34
      %s51 = sphi 0, %s35
      %s55 = sphi 0, %s55
      %s57 = sphi 0, %s55
      %s58 = sphi 0, %s57
      %s72 = sphi 0, %s58
      %s76 = sphi 0, %s76
      %s78 = sphi 0, %s76
      %s79 = sphi 0, %s78
      %s93 = sphi 0, %s79
      %s97 = sphi 0, %s97
      %s99 = sphi 0, %s97
      %s100 = sphi 0, %s99
      %s114 = sphi 0, %s100
      %s118 = sphi 0, %s118
      %s120 = sphi 0, %s118
      %s121 = sphi 0, %s120
      %s135 = sphi 0, %s121
      %s139 = sphi 0, %s139
      %s141 = sphi 0, %s139
      %s142 = sphi 0, %s141
      %s156 = sphi 0, %s142
      %s160 = sphi 0, %s160
      %s162 = sphi 0, %s160
      %s163 = sphi 0, %s162
      %s177 = sphi 0, %s163
      %s181 = sphi 0, %s181
      %s183 = sphi 0, %s181
      %s184 = sphi 0, %s183
      %s198 = sphi 0, %s184
      %s202 = sphi 0, %s202
      %s204 = sphi 0, %s202
      %s205 = sphi 0, %s204
      %s219 = sphi 0, %s205
      %s223 = sphi 0, %s223
      %s225 = sphi 0, %s223
      %s226 = sphi 0, %s225
      %s240 = sphi 0, %s226
      %s244 = sphi 0, %s244
      %s246 = sphi 0, %s244
      %s247 = sphi 0, %s246
      %s261 = sphi 0, %s247
      %s265 = sphi 0, %s265
      %s267 = sphi 0, %s265
      %s268 = sphi 0, %s267
      %s282 = sphi 0, %s268
      %s288 = sphi 0, %s290
      %s291 = sphi 0, %s288
      %s292 = sphi 0, %s291
      %s308 = sphi 0, %s292
    $region4: #{tpu_custom_call.1} parent=1 // loop_header_branch
      %24 = sbr.rel (%p22) target = $region8
    $region5: #{tpu_custom_call.1} parent=1 // loop_body
      %s26 = ssub.s32 %s21, 1
      %s27 = ssub.s32 %s21, 2
      %s28 = sadd.s32 %s21, 1
      %s29 = ssub.s32 %s21, %s28
      %p30 = scmp.eq.s32.totalorder %s29, 0
      %s32 = sadd.s32 %s31, 1
      %s33 = scalar_select %p30, %s31, %s32
      %p36 = pneg %p30
      %p37 = scmp.eq.s32.totalorder %s21, 1
      %p38 = por %p36, %p37
      %p39 = scmp.ne.s32.totalorder %s31, %s34
      %p40 = scmp.eq.s32.totalorder %s21, 0
      %p41 = por %p39, %p40
      %p42 = scmp.ne.s32.totalorder %s31, %s34
      %p43 = scmp.eq.s32.totalorder %s26, 1
      %p44 = por %p42, %p43
      %p45 = scmp.ne.s32.totalorder %s34, %s35
      %p46 = scmp.eq.s32.totalorder %s26, 0
      %p47 = por %p45, %p46
      %p48 = scmp.ne.s32.totalorder %s34, %s35
      %p49 = scmp.eq.s32.totalorder %s27, 1
      %p50 = por %p48, %p49
      %p52 = scmp.ne.s32.totalorder %s35, %s51
      %p53 = scmp.eq.s32.totalorder %s27, 0
      %p54 = por %p52, %p53
      %s56 = sadd.s32 %s55, 1
      %p59 = scmp.eq.s32.totalorder %s21, 1
      %p60 = scmp.ne.s32.totalorder %s55, %s57
      %p61 = scmp.eq.s32.totalorder %s21, 0
      %p62 = por %p60, %p61
      %p63 = scmp.ne.s32.totalorder %s55, %s57
      %p64 = scmp.eq.s32.totalorder %s26, 1
      %p65 = por %p63, %p64
      %p66 = scmp.ne.s32.totalorder %s57, %s58
      %p67 = scmp.eq.s32.totalorder %s26, 0
      %p68 = por %p66, %p67
      %p69 = scmp.ne.s32.totalorder %s57, %s58
      %p70 = scmp.eq.s32.totalorder %s27, 1
      %p71 = por %p69, %p70
      %p73 = scmp.ne.s32.totalorder %s58, %s72
      %p74 = scmp.eq.s32.totalorder %s27, 0
      %p75 = por %p73, %p74
      %s77 = sadd.s32 %s76, 1
      %p80 = scmp.eq.s32.totalorder %s21, 1
      %p81 = scmp.ne.s32.totalorder %s76, %s78
      %p82 = scmp.eq.s32.totalorder %s21, 0
      %p83 = por %p81, %p82
      %p84 = scmp.ne.s32.totalorder %s76, %s78
      %p85 = scmp.eq.s32.totalorder %s26, 1
      %p86 = por %p84, %p85
      %p87 = scmp.ne.s32.totalorder %s78, %s79
      %p88 = scmp.eq.s32.totalorder %s26, 0
      %p89 = por %p87, %p88
      %p90 = scmp.ne.s32.totalorder %s78, %s79
      %p91 = scmp.eq.s32.totalorder %s27, 1
      %p92 = por %p90, %p91
      %p94 = scmp.ne.s32.totalorder %s79, %s93
      %p95 = scmp.eq.s32.totalorder %s27, 0
      %p96 = por %p94, %p95
      %s98 = sadd.s32 %s97, 1
      %p101 = scmp.eq.s32.totalorder %s21, 1
      %p102 = scmp.ne.s32.totalorder %s97, %s99
      %p103 = scmp.eq.s32.totalorder %s21, 0
      %p104 = por %p102, %p103
      %p105 = scmp.ne.s32.totalorder %s97, %s99
      %p106 = scmp.eq.s32.totalorder %s26, 1
      %p107 = por %p105, %p106
      %p108 = scmp.ne.s32.totalorder %s99, %s100
      %p109 = scmp.eq.s32.totalorder %s26, 0
      %p110 = por %p108, %p109
      %p111 = scmp.ne.s32.totalorder %s99, %s100
      %p112 = scmp.eq.s32.totalorder %s27, 1
      %p113 = por %p111, %p112
      %p115 = scmp.ne.s32.totalorder %s100, %s114
      %p116 = scmp.eq.s32.totalorder %s27, 0
      %p117 = por %p115, %p116
      %s119 = sadd.s32 %s118, 1
      %p122 = scmp.eq.s32.totalorder %s21, 1
      %p123 = scmp.ne.s32.totalorder %s118, %s120
      %p124 = scmp.eq.s32.totalorder %s21, 0
      %p125 = por %p123, %p124
      %p126 = scmp.ne.s32.totalorder %s118, %s120
      %p127 = scmp.eq.s32.totalorder %s26, 1
      %p128 = por %p126, %p127
      %p129 = scmp.ne.s32.totalorder %s120, %s121
      %p130 = scmp.eq.s32.totalorder %s26, 0
      %p131 = por %p129, %p130
      %p132 = scmp.ne.s32.totalorder %s120, %s121
      %p133 = scmp.eq.s32.totalorder %s27, 1
      %p134 = por %p132, %p133
      %p136 = scmp.ne.s32.totalorder %s121, %s135
      %p137 = scmp.eq.s32.totalorder %s27, 0
      %p138 = por %p136, %p137
      %s140 = sadd.s32 %s139, 1
      %p143 = scmp.eq.s32.totalorder %s21, 1
      %p144 = scmp.ne.s32.totalorder %s139, %s141
      %p145 = scmp.eq.s32.totalorder %s21, 0
      %p146 = por %p144, %p145
      %p147 = scmp.ne.s32.totalorder %s139, %s141
      %p148 = scmp.eq.s32.totalorder %s26, 1
      %p149 = por %p147, %p148
      %p150 = scmp.ne.s32.totalorder %s141, %s142
      %p151 = scmp.eq.s32.totalorder %s26, 0
      %p152 = por %p150, %p151
      %p153 = scmp.ne.s32.totalorder %s141, %s142
      %p154 = scmp.eq.s32.totalorder %s27, 1
      %p155 = por %p153, %p154
      %p157 = scmp.ne.s32.totalorder %s142, %s156
      %p158 = scmp.eq.s32.totalorder %s27, 0
      %p159 = por %p157, %p158
      %s161 = sadd.s32 %s160, 1
      %p164 = scmp.eq.s32.totalorder %s21, 1
      %p165 = scmp.ne.s32.totalorder %s160, %s162
      %p166 = scmp.eq.s32.totalorder %s21, 0
      %p167 = por %p165, %p166
      %p168 = scmp.ne.s32.totalorder %s160, %s162
      %p169 = scmp.eq.s32.totalorder %s26, 1
      %p170 = por %p168, %p169
      %p171 = scmp.ne.s32.totalorder %s162, %s163
      %p172 = scmp.eq.s32.totalorder %s26, 0
      %p173 = por %p171, %p172
      %p174 = scmp.ne.s32.totalorder %s162, %s163
      %p175 = scmp.eq.s32.totalorder %s27, 1
      %p176 = por %p174, %p175
      %p178 = scmp.ne.s32.totalorder %s163, %s177
      %p179 = scmp.eq.s32.totalorder %s27, 0
      %p180 = por %p178, %p179
      %s182 = sadd.s32 %s181, 1
      %p185 = scmp.eq.s32.totalorder %s21, 1
      %p186 = scmp.ne.s32.totalorder %s181, %s183
      %p187 = scmp.eq.s32.totalorder %s21, 0
      %p188 = por %p186, %p187
      %p189 = scmp.ne.s32.totalorder %s181, %s183
      %p190 = scmp.eq.s32.totalorder %s26, 1
      %p191 = por %p189, %p190
      %p192 = scmp.ne.s32.totalorder %s183, %s184
      %p193 = scmp.eq.s32.totalorder %s26, 0
      %p194 = por %p192, %p193
      %p195 = scmp.ne.s32.totalorder %s183, %s184
      %p196 = scmp.eq.s32.totalorder %s27, 1
      %p197 = por %p195, %p196
      %p199 = scmp.ne.s32.totalorder %s184, %s198
      %p200 = scmp.eq.s32.totalorder %s27, 0
      %p201 = por %p199, %p200
      %s203 = sadd.s32 %s202, 1
      %p206 = scmp.eq.s32.totalorder %s21, 1
      %p207 = scmp.ne.s32.totalorder %s202, %s204
      %p208 = scmp.eq.s32.totalorder %s21, 0
      %p209 = por %p207, %p208
      %p210 = scmp.ne.s32.totalorder %s202, %s204
      %p211 = scmp.eq.s32.totalorder %s26, 1
      %p212 = por %p210, %p211
      %p213 = scmp.ne.s32.totalorder %s204, %s205
      %p214 = scmp.eq.s32.totalorder %s26, 0
      %p215 = por %p213, %p214
      %p216 = scmp.ne.s32.totalorder %s204, %s205
      %p217 = scmp.eq.s32.totalorder %s27, 1
      %p218 = por %p216, %p217
      %p220 = scmp.ne.s32.totalorder %s205, %s219
      %p221 = scmp.eq.s32.totalorder %s27, 0
      %p222 = por %p220, %p221
      %s224 = sadd.s32 %s223, 1
      %p227 = scmp.eq.s32.totalorder %s21, 1
      %p228 = scmp.ne.s32.totalorder %s223, %s225
      %p229 = scmp.eq.s32.totalorder %s21, 0
      %p230 = por %p228, %p229
      %p231 = scmp.ne.s32.totalorder %s223, %s225
      %p232 = scmp.eq.s32.totalorder %s26, 1
      %p233 = por %p231, %p232
      %p234 = scmp.ne.s32.totalorder %s225, %s226
      %p235 = scmp.eq.s32.totalorder %s26, 0
      %p236 = por %p234, %p235
      %p237 = scmp.ne.s32.totalorder %s225, %s226
      %p238 = scmp.eq.s32.totalorder %s27, 1
      %p239 = por %p237, %p238
      %p241 = scmp.ne.s32.totalorder %s226, %s240
      %p242 = scmp.eq.s32.totalorder %s27, 0
      %p243 = por %p241, %p242
      %s245 = sadd.s32 %s244, 1
      %p248 = scmp.eq.s32.totalorder %s21, 1
      %p249 = scmp.ne.s32.totalorder %s244, %s246
      %p250 = scmp.eq.s32.totalorder %s21, 0
      %p251 = por %p249, %p250
      %p252 = scmp.ne.s32.totalorder %s244, %s246
      %p253 = scmp.eq.s32.totalorder %s26, 1
      %p254 = por %p252, %p253
      %p255 = scmp.ne.s32.totalorder %s246, %s247
      %p256 = scmp.eq.s32.totalorder %s26, 0
      %p257 = por %p255, %p256
      %p258 = scmp.ne.s32.totalorder %s246, %s247
      %p259 = scmp.eq.s32.totalorder %s27, 1
      %p260 = por %p258, %p259
      %p262 = scmp.ne.s32.totalorder %s247, %s261
      %p263 = scmp.eq.s32.totalorder %s27, 0
      %p264 = por %p262, %p263
      %s266 = sadd.s32 %s265, 1
      %p269 = scmp.eq.s32.totalorder %s21, 1
      %p270 = scmp.ne.s32.totalorder %s265, %s267
      %p271 = scmp.eq.s32.totalorder %s21, 0
      %p272 = por %p270, %p271
      %p273 = scmp.ne.s32.totalorder %s265, %s267
      %p274 = scmp.eq.s32.totalorder %s26, 1
      %p275 = por %p273, %p274
      %p276 = scmp.ne.s32.totalorder %s267, %s268
      %p277 = scmp.eq.s32.totalorder %s26, 0
      %p278 = por %p276, %p277
      %p279 = scmp.ne.s32.totalorder %s267, %s268
      %p280 = scmp.eq.s32.totalorder %s27, 1
      %p281 = por %p279, %p280
      %p283 = scmp.ne.s32.totalorder %s268, %s282
      %p284 = scmp.eq.s32.totalorder %s27, 0
      %p285 = por %p283, %p284
      %s286 = ssub.s32 %s21, %s28
      %p287 = scmp.eq.s32.totalorder %s286, 0
      %s289 = sadd.s32 %s288, 1
      %s290 = scalar_select %p287, %s288, %s289
      %p293 = pneg %p287
      %p294 = scmp.eq.s32.totalorder %s21, 1
      %p295 = por %p293, %p294
      %p296 = scmp.ne.s32.totalorder %s288, %s291
      %p297 = scmp.eq.s32.totalorder %s21, 0
      %p298 = por %p296, %p297
      %p299 = scmp.ne.s32.totalorder %s288, %s291
      %p300 = scmp.eq.s32.totalorder %s26, 1
      %p301 = por %p299, %p300
      %p302 = scmp.ne.s32.totalorder %s291, %s292
      %p303 = scmp.eq.s32.totalorder %s26, 0
      %p304 = por %p302, %p303
      %p305 = scmp.ne.s32.totalorder %s291, %s292
      %p306 = scmp.eq.s32.totalorder %s27, 1
      %p307 = por %p305, %p306
      %p309 = scmp.ne.s32.totalorder %s292, %s308
      %p310 = scmp.eq.s32.totalorder %s27, 0
      %p311 = por %p309, %p310
      %p312 = scmp.le.s32.totalorder 1, %s21
      %p313 = scmp.lt.s32.totalorder %s21, 3
      %p314 = pnand %p312, %p313
      %p315 = pneg %p314
      // Predicated region
      $region9: #{tpu_custom_call.1} parent=5 // pred_check
        _
      $region10: #{tpu_custom_call.1} parent=5 // pred_check_branch
        %317 = sbr.rel (%p314) target = $region12
      $region11: #{tpu_custom_call.1} parent=5 // pred_region
        %s318 = ssub.s32 %s21, 1
        // Predicated region
        $region13: #{tpu_custom_call.1} parent=11 // pred_check
          %p319 = pneg %p68
        $region14: #{tpu_custom_call.1} parent=11 // pred_check_branch
          %321 = sbr.rel (%p319) target = $region16
        $region15: #{tpu_custom_call.1} parent=11 // pred_region
          _
        $region16: #{tpu_custom_call.1} parent=11 // pred_fallthru
          _
        // Predicated region
        $region17: #{tpu_custom_call.1} parent=11 // pred_check
          %p322 = pneg %p89
        $region18: #{tpu_custom_call.1} parent=11 // pred_check_branch
          %324 = sbr.rel (%p322) target = $region20
        $region19: #{tpu_custom_call.1} parent=11 // pred_region
          _
        $region20: #{tpu_custom_call.1} parent=11 // pred_fallthru
          _
        // Predicated region
        $region21: #{tpu_custom_call.1} parent=11 // pred_check
          %p325 = pneg %p110
        $region22: #{tpu_custom_call.1} parent=11 // pred_check_branch
          %327 = sbr.rel (%p325) target = $region24
        $region23: #{tpu_custom_call.1} parent=11 // pred_region
          _
        $region24: #{tpu_custom_call.1} parent=11 // pred_fallthru
          _
        // Predicated region
        $region25: #{tpu_custom_call.1} parent=11 // pred_check
          %p328 = pneg %p131
        $region26: #{tpu_custom_call.1} parent=11 // pred_check_branch
          %330 = sbr.rel (%p328) target = $region28
        $region27: #{tpu_custom_call.1} parent=11 // pred_region
          _
        $region28: #{tpu_custom_call.1} parent=11 // pred_fallthru
          _
        // Predicated region
        $region29: #{tpu_custom_call.1} parent=11 // pred_check
          %p331 = pneg %p152
        $region30: #{tpu_custom_call.1} parent=11 // pred_check_branch
          %333 = sbr.rel (%p331) target = $region32
        $region31: #{tpu_custom_call.1} parent=11 // pred_region
          _
        $region32: #{tpu_custom_call.1} parent=11 // pred_fallthru
          _
        // Predicated region
        $region33: #{tpu_custom_call.1} parent=11 // pred_check
          %p334 = pneg %p173
        $region34: #{tpu_custom_call.1} parent=11 // pred_check_branch
          %336 = sbr.rel (%p334) target = $region36
        $region35: #{tpu_custom_call.1} parent=11 // pred_region
          _
        $region36: #{tpu_custom_call.1} parent=11 // pred_fallthru
          _
        // Predicated region
        $region37: #{tpu_custom_call.1} parent=11 // pred_check
          %p337 = pneg %p194
        $region38: #{tpu_custom_call.1} parent=11 // pred_check_branch
          %339 = sbr.rel (%p337) target = $region40
        $region39: #{tpu_custom_call.1} parent=11 // pred_region
          _
        $region40: #{tpu_custom_call.1} parent=11 // pred_fallthru
          _
        // Predicated region
        $region41: #{tpu_custom_call.1} parent=11 // pred_check
          %p340 = pneg %p215
        $region42: #{tpu_custom_call.1} parent=11 // pred_check_branch
          %342 = sbr.rel (%p340) target = $region44
        $region43: #{tpu_custom_call.1} parent=11 // pred_region
          _
        $region44: #{tpu_custom_call.1} parent=11 // pred_fallthru
          _
        // Predicated region
        $region45: #{tpu_custom_call.1} parent=11 // pred_check
          %p343 = pneg %p236
        $region46: #{tpu_custom_call.1} parent=11 // pred_check_branch
          %345 = sbr.rel (%p343) target = $region48
        $region47: #{tpu_custom_call.1} parent=11 // pred_region
          _
        $region48: #{tpu_custom_call.1} parent=11 // pred_fallthru
          _
        // Predicated region
        $region49: #{tpu_custom_call.1} parent=11 // pred_check
          %p346 = pneg %p257
        $region50: #{tpu_custom_call.1} parent=11 // pred_check_branch
          %348 = sbr.rel (%p346) target = $region52
        $region51: #{tpu_custom_call.1} parent=11 // pred_region
          _
        $region52: #{tpu_custom_call.1} parent=11 // pred_fallthru
          _
        // Predicated region
        $region53: #{tpu_custom_call.1} parent=11 // pred_check
          %p349 = pneg %p278
        $region54: #{tpu_custom_call.1} parent=11 // pred_check_branch
          %351 = sbr.rel (%p349) target = $region56
        $region55: #{tpu_custom_call.1} parent=11 // pred_region
          _
        $region56: #{tpu_custom_call.1} parent=11 // pred_fallthru
          _
      $region12: #{tpu_custom_call.1} parent=5 // pred_fallthru
        _
      %p352 = scmp.lt.s32.totalorder %s21, 2
      // Predicated region
      $region57: #{tpu_custom_call.1} parent=5 // pred_check
        %p353 = pneg %p352
      $region58: #{tpu_custom_call.1} parent=5 // pred_check_branch
        %355 = sbr.rel (%p353) target = $region60
      $region59: #{tpu_custom_call.1} parent=5 // pred_region
        // Predicated region
        $region61: #{tpu_custom_call.1} parent=59 // pred_check
          %p356 = pneg %p41
        $region62: #{tpu_custom_call.1} parent=59 // pred_check_branch
          %358 = sbr.rel (%p356) target = $region64
        $region63: #{tpu_custom_call.1} parent=59 // pred_region
          %p359 = scmp.lt.s32.totalorder %s21, 1
          %s360 = scalar_select %p359, %s21, 1
          %s361 = smul.addr %s360, 8
          %s362 = scalar_lea.vmem %s0, %s361
        $region64: #{tpu_custom_call.1} parent=59 // pred_fallthru
          _
      $region60: #{tpu_custom_call.1} parent=5 // pred_fallthru
        _
      %p363 = scmp.le.s32.totalorder 1, %s21
      %p364 = scmp.lt.s32.totalorder %s21, 3
      %p365 = pnand %p363, %p364
      %p366 = pneg %p365
      // Predicated region
      $region65: #{tpu_custom_call.1} parent=5 // pred_check
        _
      $region66: #{tpu_custom_call.1} parent=5 // pred_check_branch
        %368 = sbr.rel (%p365) target = $region68
      $region67: #{tpu_custom_call.1} parent=5 // pred_region
        %s369 = ssub.s32 %s21, 1
        %p370 = scmp.lt.s32.totalorder %s26, 1
        %s371 = scalar_select %p370, %s26, 1
        %s372 = smul.addr %s371, 8
        %s373 = scalar_lea.vmem %s0, %s372
        %p374 = pneg %p47
        %p375 = pneg %p44
        %p376 = pneg %p68
        %p377 = pneg %p65
        %p378 = pneg %p89
        %p379 = pneg %p86
        %p380 = pneg %p110
        %p381 = pneg %p107
        %p382 = pneg %p131
        %p383 = pneg %p128
        %p384 = pneg %p152
        %p385 = pneg %p149
        %p386 = pneg %p173
        %p387 = pneg %p170
        %p388 = pneg %p194
        %p389 = pneg %p191
        %p390 = pneg %p215
        %p391 = pneg %p212
        %p392 = pneg %p236
        %p393 = pneg %p233
        %p394 = pneg %p257
        %p395 = pneg %p254
        %p396 = pneg %p278
        %p397 = pneg %p275
        %p398 = pneg %p304
        %p399 = pneg %p301
        %s400 = sand.u32 %s291, 1
        %s401 = scalar_lea.sflag [#allocation3], %s400
        %s402 = sand.u32 %s291, 1
        %s403 = smul.addr %s402, 8
        %s404 = scalar_lea.vmem [#allocation2], %s403
        %p405 = scmp.lt.s32.totalorder %s26, 1
        %s406 = scalar_select %p405, %s26, 1
        %s407 = smul.addr %s406, 8
        %s408 = scalar_lea.vmem %s0, %s407
        %v410 = vld [vmem:[%s408] sm:$0xff]
        %v411 = vld [vmem:[%s1] sm:$0x1]
        %v412 = vld [vmem:[%s2] sm:$0x1]
        %vm413 = vcmask 261120
        %v414 = vsel %vm413, %v410, 0.0
        %415 = vadd.xlane.f32.xlu0 %v414
        %v416 = vpop.xlane.xlu0 %415
        %v417 = vrcp.pop 32.0
        %v418 = vmul.f32 32.0, %v417
        %v419 = vsub.f32 1.0, %v418
        %v420 = vmul.f32 %v417, %v419
        %v421 = vadd.f32 %v417, %v420
        %vm422 = vweird.f32 %v417
        %v423 = vsel %vm422, %v417, %v421
        %v424 = vmul.f32 %v416, %v423
        %v425 = vsub.f32 %v410, %v424
        %v426 = vmul.f32 %v425, %v425
        %v427 = vsel %vm413, %v426, 0.0
        %428 = vadd.xlane.f32.xlu0 %v427
        %v429 = vpop.xlane.xlu0 %428
        %v430 = vmul.f32 %v429, %v423
        %v431 = vadd.f32 %v430, 1e-05
        %v432 = vrsqrt.pop %v431
        %v433 = vmul.f32 %v432, %v431
        %v434 = vmul.f32 %v433, %v432
        %v435 = vmul.f32 0.5, %v434
        %v436 = vsub.f32 1.5, %v435
        %v437 = vmul.f32 %v432, %v436
        %vm438 = vweird.f32 %v431
        %vm439 = vweird.f32 %v432
        %vm440 = vmor %vm438, %vm439
        %v441 = vsel %vm440, %v432, %v437
        %v442 = vmul.f32 %v425, %v441
        %v444 = vperm.slane %v411, 0
        %v446 = vmul.f32 %v442, %v444
        %v448 = vperm.slane %v412, 0
        %v450 = vadd.f32 %v446, %v448
        %v451 = vpack.c.bf16 %v450, %v450
        %v452 = vld [vmem:[%s3] sm:$0xf]
        %v453 = vld [vmem:[%s3 + $0x4] sm:$0xf]
        %v454 = vld [vmem:[%s3 + $0x8] sm:$0xf]
        %v455 = vld [vmem:[%s3 + $0xc] sm:$0xf]
        %v460 = vunpack.c.l.b16 %v452
        %v461 = vunpack.c.l.b16 %v453
        %v462 = vunpack.c.l.b16 %v454
        %v463 = vunpack.c.l.b16 %v455
        %v464 = vpack.c.b16 %v461, %v460
        %v465 = vpack.c.b16 %v463, %v462
        %v469 = vsel %vm413, %v451, 0
        %471 = vmatpush.bf16.msra.mxu0 0
        %472 = vmatpush.bf16.msra.mxu0 0
        %473 = vmatpush.bf16.msra.mxu0 0
        %474 = vmatpush.bf16.msra.mxu0 0
        %475 = vmatpush.bf16.msra.mxu0 0
        %476 = vmatpush.bf16.msra.mxu0 0
        %477 = vmatpush.bf16.msra.mxu0 %v465
        %478 = vmatpush.bf16.msra.mxu0 %v464
        %479 = vmatmul.bf16.gmra.mxu0 %v469
        %v480 = vpop.f32.mrf.mxu0
        %v481 = vadd.f32 0.0, %v480
        %v482 = vpop.f32.mrf.mxu0
        %483 = vdwg.mxu0
        %vm484 = vcmask 523520
        %485 = vst.msk [vmem:[%s404] sm:$0xff] %vm484, %v481
        %vm486 = vcmask 785920
        %487 = vst.msk [vmem:[%s404] sm:$0xff] %vm486, %v481
        %v488 = vld [vmem:[%s4] sm:$0xf]
        %v489 = vld [vmem:[%s4 + $0x4] sm:$0xf]
        %v490 = vld [vmem:[%s4 + $0x8] sm:$0xf]
        %v491 = vld [vmem:[%s4 + $0xc] sm:$0xf]
        %v492 = vpack.c.bf16 %v481, %v481
        %v494 = vunpack.c.l.b16 %v492
        %v495 = vpack.c.b16 %v494, %v494
        %496 = vrot.lane.b32.xlu0 %v495, 96
        %v497 = vpop.permute.xlu0 %496
        %vm498 = vcmask 64512
        %v500 = vsel %vm498, %v492, 0
        %v503 = vsel %vm498, %v497, 0
        %505 = vmatpush.bf16.xpose.msra.mxu0 0
        %506 = vmatpush.bf16.xpose.msra.mxu0 0
        %507 = vmatpush.bf16.xpose.msra.mxu0 0
        %508 = vmatpush.bf16.xpose.msra.mxu0 0
        %509 = vmatpush.bf16.xpose.msra.mxu0 0
        %510 = vmatpush.bf16.xpose.msra.mxu0 0
        %511 = vmatpush.bf16.xpose.msra.mxu0 0
        %512 = vmatpush.bf16.xpose.msra.mxu0 %v503
        %513 = vmatmul.bf16.gmra.mxu0 %v500
        %v514 = vpop.f32.mrf.mxu0
        %v515 = vadd.f32 0.0, %v514
        %v516 = vpop.f32.mrf.mxu0
        %517 = vdwg.mxu0
        %v518 = vsel %vm498, %v515, -inf
        %v519 = vrot.slane %v518, 4
        %v520 = vmax.f32 %v518, %v519
        %v521 = vrot.slane %v520, 2
        %v522 = vmax.f32 %v520, %v521
        %v523 = vrot.slane %v522, 1
        %v524 = vmax.f32 %v522, %v523
        %v525 = vsub.f32 %v515, %v524
        %v526 = vmul.f32 %v525, 1.442695
        %v527 = vpow.pop %v526
        %v528 = vsel %vm498, %v527, 0.0
        %v529 = vrot.slane %v528, 4
        %v530 = vadd.f32 %v528, %v529
        %v531 = vrot.slane %v530, 2
        %v532 = vadd.f32 %v530, %v531
        %v533 = vrot.slane %v532, 1
        %v534 = vadd.f32 %v532, %v533
        %v535 = vrcp.pop %v534
        %v536 = vmul.f32 %v527, %v535
        %v537 = vpack.c.bf16 %v536, %v536
        %538 = vrot.lane.b32.xlu0 %v495, 64
        %v539 = vpop.permute.xlu0 %538
        %v541 = vsel %vm498, %v537, 0
        %vm543 = vcmask 1043456
        %v545 = vsel %vm543, %v539, 0
        %547 = vmatpush.bf16.msra.mxu0 0
        %548 = vmatpush.bf16.msra.mxu0 0
        %549 = vmatpush.bf16.msra.mxu0 0
        %550 = vmatpush.bf16.msra.mxu0 0
        %551 = vmatpush.bf16.msra.mxu0 0
        %552 = vmatpush.bf16.msra.mxu0 0
        %553 = vmatpush.bf16.msra.mxu0 0
        %554 = vmatpush.bf16.msra.mxu0 %v545
        %555 = vmatmul.bf16.gmra.mxu0 %v541
        %v556 = vpop.f32.mrf.mxu0
        %v557 = vadd.f32 0.0, %v556
        %v558 = vpop.f32.mrf.mxu0
        %559 = vdwg.mxu0
        %v560 = vpack.c.bf16 %v557, %v557
        %561 = vrot.lane.b32.xlu0 %v495, 120
        %v562 = vpop.permute.xlu0 %561
        %563 = vrot.lane.b32.xlu0 %v495, 88
        %v564 = vpop.permute.xlu0 %563
        %v566 = vsel %vm498, %v562, 0
        %v569 = vsel %vm498, %v564, 0
        %571 = vmatpush.bf16.xpose.msra.mxu0 0
        %572 = vmatpush.bf16.xpose.msra.mxu0 0
        %573 = vmatpush.bf16.xpose.msra.mxu0 0
        %574 = vmatpush.bf16.xpose.msra.mxu0 0
        %575 = vmatpush.bf16.xpose.msra.mxu0 0
        %576 = vmatpush.bf16.xpose.msra.mxu0 0
        %577 = vmatpush.bf16.xpose.msra.mxu0 0
        %578 = vmatpush.bf16.xpose.msra.mxu0 %v569
        %579 = vmatmul.bf16.gmra.mxu0 %v566
        %v580 = vpop.f32.mrf.mxu0
        %v581 = vadd.f32 0.0, %v580
        %v582 = vpop.f32.mrf.mxu0
        %583 = vdwg.mxu0
        %v584 = vsel %vm498, %v581, -inf
        %v585 = vrot.slane %v584, 4
        %v586 = vmax.f32 %v584, %v585
        %v587 = vrot.slane %v586, 2
        %v588 = vmax.f32 %v586, %v587
        %v589 = vrot.slane %v588, 1
        %v590 = vmax.f32 %v588, %v589
        %v591 = vsub.f32 %v581, %v590
        %v592 = vmul.f32 %v591, 1.442695
        %v593 = vpow.pop %v592
        %v594 = vsel %vm498, %v593, 0.0
        %v595 = vrot.slane %v594, 4
        %v596 = vadd.f32 %v594, %v595
        %v597 = vrot.slane %v596, 2
        %v598 = vadd.f32 %v596, %v597
        %v599 = vrot.slane %v598, 1
        %v600 = vadd.f32 %v598, %v599
        %v601 = vrcp.pop %v600
        %v602 = vmul.f32 %v593, %v601
        %v603 = vpack.c.bf16 %v602, %v602
        %604 = vrot.lane.b32.xlu0 %v495, 56
        %v605 = vpop.permute.xlu0 %604
        %v607 = vsel %vm498, %v603, 0
        %v610 = vsel %vm543, %v605, 0
        %612 = vmatpush.bf16.msra.mxu0 0
        %613 = vmatpush.bf16.msra.mxu0 0
        %614 = vmatpush.bf16.msra.mxu0 0
        %615 = vmatpush.bf16.msra.mxu0 0
        %616 = vmatpush.bf16.msra.mxu0 0
        %617 = vmatpush.bf16.msra.mxu0 0
        %618 = vmatpush.bf16.msra.mxu0 0
        %619 = vmatpush.bf16.msra.mxu0 %v610
        %620 = vmatmul.bf16.gmra.mxu0 %v607
        %v621 = vpop.f32.mrf.mxu0
        %v622 = vadd.f32 0.0, %v621
        %v623 = vpop.f32.mrf.mxu0
        %624 = vdwg.mxu0
        %v625 = vpack.c.bf16 %v622, %v622
        %v627 = vsel %vm498, %v625, 0
        %v630 = vsel %vm543, %v489, 0
        %632 = vmatpush.bf16.msra.mxu0 0
        %633 = vmatpush.bf16.msra.mxu0 0
        %634 = vmatpush.bf16.msra.mxu0 0
        %635 = vmatpush.bf16.msra.mxu0 0
        %636 = vmatpush.bf16.msra.mxu0 0
        %637 = vmatpush.bf16.msra.mxu0 0
        %638 = vmatpush.bf16.msra.mxu0 0
        %639 = vmatpush.bf16.msra.mxu0 %v630
        %640 = vmatmul.bf16.gmra.mxu0 %v627
        %v641 = vpop.f32.mrf.mxu0
        %v642 = vadd.f32 0.0, %v641
        %v643 = vpop.f32.mrf.mxu0
        %644 = vdwg.mxu0
        %v646 = vsel %vm498, %v560, 0
        %v649 = vsel %vm543, %v488, 0
        %651 = vmatpush.bf16.msra.mxu0 0
        %652 = vmatpush.bf16.msra.mxu0 0
        %653 = vmatpush.bf16.msra.mxu0 0
        %654 = vmatpush.bf16.msra.mxu0 0
        %655 = vmatpush.bf16.msra.mxu0 0
        %656 = vmatpush.bf16.msra.mxu0 0
        %657 = vmatpush.bf16.msra.mxu0 0
        %658 = vmatpush.bf16.msra.mxu0 %v649
        %659 = vmatmul.bf16.gmra.mxu0 %v646
        %v660 = vpop.f32.mrf.mxu0
        %v661 = vadd.f32 %v642, %v660
        %v662 = vpop.f32.mrf.mxu0
        %663 = vdwg.mxu0
        %664 = vrot.lane.b32.xlu0 %v495, 112
        %v665 = vpop.permute.xlu0 %664
        %666 = vrot.lane.b32.xlu0 %v495, 80
        %v667 = vpop.permute.xlu0 %666
        %v669 = vsel %vm498, %v665, 0
        %v672 = vsel %vm498, %v667, 0
        %674 = vmatpush.bf16.xpose.msra.mxu0 0
        %675 = vmatpush.bf16.xpose.msra.mxu0 0
        %676 = vmatpush.bf16.xpose.msra.mxu0 0
        %677 = vmatpush.bf16.xpose.msra.mxu0 0
        %678 = vmatpush.bf16.xpose.msra.mxu0 0
        %679 = vmatpush.bf16.xpose.msra.mxu0 0
        %680 = vmatpush.bf16.xpose.msra.mxu0 0
        %681 = vmatpush.bf16.xpose.msra.mxu0 %v672
        %682 = vmatmul.bf16.gmra.mxu0 %v669
        %v683 = vpop.f32.mrf.mxu0
        %v684 = vadd.f32 0.0, %v683
        %v685 = vpop.f32.mrf.mxu0
        %686 = vdwg.mxu0
        %v687 = vsel %vm498, %v684, -inf
        %v688 = vrot.slane %v687, 4
        %v689 = vmax.f32 %v687, %v688
        %v690 = vrot.slane %v689, 2
        %v691 = vmax.f32 %v689, %v690
        %v692 = vrot.slane %v691, 1
        %v693 = vmax.f32 %v691, %v692
        %v694 = vsub.f32 %v684, %v693
        %v695 = vmul.f32 %v694, 1.442695
        %v696 = vpow.pop %v695
        %v697 = vsel %vm498, %v696, 0.0
        %v698 = vrot.slane %v697, 4
        %v699 = vadd.f32 %v697, %v698
        %v700 = vrot.slane %v699, 2
        %v701 = vadd.f32 %v699, %v700
        %v702 = vrot.slane %v701, 1
        %v703 = vadd.f32 %v701, %v702
        %v704 = vrcp.pop %v703
        %v705 = vmul.f32 %v696, %v704
        %v706 = vpack.c.bf16 %v705, %v705
        %707 = vrot.lane.b32.xlu0 %v495, 48
        %v708 = vpop.permute.xlu0 %707
        %v710 = vsel %vm498, %v706, 0
        %v713 = vsel %vm543, %v708, 0
        %715 = vmatpush.bf16.msra.mxu0 0
        %716 = vmatpush.bf16.msra.mxu0 0
        %717 = vmatpush.bf16.msra.mxu0 0
        %718 = vmatpush.bf16.msra.mxu0 0
        %719 = vmatpush.bf16.msra.mxu0 0
        %720 = vmatpush.bf16.msra.mxu0 0
        %721 = vmatpush.bf16.msra.mxu0 0
        %722 = vmatpush.bf16.msra.mxu0 %v713
        %723 = vmatmul.bf16.gmra.mxu0 %v710
        %v724 = vpop.f32.mrf.mxu0
        %v725 = vadd.f32 0.0, %v724
        %v726 = vpop.f32.mrf.mxu0
        %727 = vdwg.mxu0
        %v728 = vpack.c.bf16 %v725, %v725
        %v730 = vsel %vm498, %v728, 0
        %v733 = vsel %vm543, %v490, 0
        %735 = vmatpush.bf16.msra.mxu0 0
        %736 = vmatpush.bf16.msra.mxu0 0
        %737 = vmatpush.bf16.msra.mxu0 0
        %738 = vmatpush.bf16.msra.mxu0 0
        %739 = vmatpush.bf16.msra.mxu0 0
        %740 = vmatpush.bf16.msra.mxu0 0
        %741 = vmatpush.bf16.msra.mxu0 0
        %742 = vmatpush.bf16.msra.mxu0 %v733
        %743 = vmatmul.bf16.gmra.mxu0 %v730
        %v744 = vpop.f32.mrf.mxu0
        %v745 = vadd.f32 0.0, %v744
        %v746 = vpop.f32.mrf.mxu0
        %747 = vdwg.mxu0
        %v748 = vadd.f32 %v661, %v745
        %749 = vrot.lane.b32.xlu0 %v495, 104
        %v750 = vpop.permute.xlu0 %749
        %751 = vrot.lane.b32.xlu0 %v495, 72
        %v752 = vpop.permute.xlu0 %751
        %v754 = vsel %vm498, %v750, 0
        %v757 = vsel %vm498, %v752, 0
        %759 = vmatpush.bf16.xpose.msra.mxu0 0
        %760 = vmatpush.bf16.xpose.msra.mxu0 0
        %761 = vmatpush.bf16.xpose.msra.mxu0 0
        %762 = vmatpush.bf16.xpose.msra.mxu0 0
        %763 = vmatpush.bf16.xpose.msra.mxu0 0
        %764 = vmatpush.bf16.xpose.msra.mxu0 0
        %765 = vmatpush.bf16.xpose.msra.mxu0 0
        %766 = vmatpush.bf16.xpose.msra.mxu0 %v757
        %767 = vmatmul.bf16.gmra.mxu0 %v754
        %v768 = vpop.f32.mrf.mxu0
        %v769 = vadd.f32 0.0, %v768
        %v770 = vpop.f32.mrf.mxu0
        %771 = vdwg.mxu0
        %v772 = vsel %vm498, %v769, -inf
        %v773 = vrot.slane %v772, 4
        %v774 = vmax.f32 %v772, %v773
        %v775 = vrot.slane %v774, 2
        %v776 = vmax.f32 %v774, %v775
        %v777 = vrot.slane %v776, 1
        %v778 = vmax.f32 %v776, %v777
        %v779 = vsub.f32 %v769, %v778
        %v780 = vmul.f32 %v779, 1.442695
        %v781 = vpow.pop %v780
        %v782 = vsel %vm498, %v781, 0.0
        %v783 = vrot.slane %v782, 4
        %v784 = vadd.f32 %v782, %v783
        %v785 = vrot.slane %v784, 2
        %v786 = vadd.f32 %v784, %v785
        %v787 = vrot.slane %v786, 1
        %v788 = vadd.f32 %v786, %v787
        %v789 = vrcp.pop %v788
        %v790 = vmul.f32 %v781, %v789
        %v791 = vpack.c.bf16 %v790, %v790
        %792 = vrot.lane.b32.xlu0 %v495, 40
        %v793 = vpop.permute.xlu0 %792
        %v795 = vsel %vm498, %v791, 0
        %v798 = vsel %vm543, %v793, 0
        %800 = vmatpush.bf16.msra.mxu0 0
        %801 = vmatpush.bf16.msra.mxu0 0
        %802 = vmatpush.bf16.msra.mxu0 0
        %803 = vmatpush.bf16.msra.mxu0 0
        %804 = vmatpush.bf16.msra.mxu0 0
        %805 = vmatpush.bf16.msra.mxu0 0
        %806 = vmatpush.bf16.msra.mxu0 0
        %807 = vmatpush.bf16.msra.mxu0 %v798
        %808 = vmatmul.bf16.gmra.mxu0 %v795
        %v809 = vpop.f32.mrf.mxu0
        %v810 = vadd.f32 0.0, %v809
        %v811 = vpop.f32.mrf.mxu0
        %812 = vdwg.mxu0
        %v813 = vpack.c.bf16 %v810, %v810
        %v815 = vsel %vm498, %v813, 0
        %v818 = vsel %vm543, %v491, 0
        %820 = vmatpush.bf16.msra.mxu0 0
        %821 = vmatpush.bf16.msra.mxu0 0
        %822 = vmatpush.bf16.msra.mxu0 0
        %823 = vmatpush.bf16.msra.mxu0 0
        %824 = vmatpush.bf16.msra.mxu0 0
        %825 = vmatpush.bf16.msra.mxu0 0
        %826 = vmatpush.bf16.msra.mxu0 0
        %827 = vmatpush.bf16.msra.mxu0 %v818
        %828 = vmatmul.bf16.gmra.mxu0 %v815
        %v829 = vpop.f32.mrf.mxu0
        %v830 = vadd.f32 0.0, %v829
        %v831 = vpop.f32.mrf.mxu0
        %832 = vdwg.mxu0
        %v833 = vadd.f32 %v748, %v830
        %v834 = vadd.f32 %v410, %v833
        %v835 = vld [vmem:[%s5] sm:$0x1]
        %v837 = vperm.slane %v835, 0
        %v839 = vadd.f32 %v834, %v837
        %v840 = vld [vmem:[%s6] sm:$0x1]
        %v841 = vld [vmem:[%s7] sm:$0x1]
        %v842 = vsel %vm413, %v839, 0.0
        %843 = vadd.xlane.f32.xlu0 %v842
        %v844 = vpop.xlane.xlu0 %843
        %v845 = vmul.f32 %v844, %v423
        %v846 = vsub.f32 %v839, %v845
        %v847 = vmul.f32 %v846, %v846
        %v848 = vsel %vm413, %v847, 0.0
        %849 = vadd.xlane.f32.xlu0 %v848
        %v850 = vpop.xlane.xlu0 %849
        %v851 = vmul.f32 %v850, %v423
        %v852 = vadd.f32 %v851, 1e-05
        %v853 = vrsqrt.pop %v852
        %v854 = vmul.f32 %v853, %v852
        %v855 = vmul.f32 %v854, %v853
        %v856 = vmul.f32 0.5, %v855
        %v857 = vsub.f32 1.5, %v856
        %v858 = vmul.f32 %v853, %v857
        %vm859 = vweird.f32 %v852
        %vm860 = vweird.f32 %v853
        %vm861 = vmor %vm859, %vm860
        %v862 = vsel %vm861, %v853, %v858
        %v863 = vmul.f32 %v846, %v862
        %v865 = vperm.slane %v840, 0
        %v867 = vmul.f32 %v863, %v865
        %v869 = vperm.slane %v841, 0
        %v871 = vadd.f32 %v867, %v869
        %v872 = vpack.c.bf16 %v871, %v871
        %v873 = vld [vmem:[%s8] sm:$0xf]
        %v874 = vld [vmem:[%s8 + $0x4] sm:$0xf]
        %v875 = vld [vmem:[%s8 + $0x8] sm:$0xf]
        %v876 = vld [vmem:[%s8 + $0xc] sm:$0xf]
        %v877 = vld [vmem:[%s9] sm:$0x1]
        %v879 = vperm.slane %v877, 0
        %v885 = vunpack.c.l.b16 %v873
        %v886 = vunpack.c.l.b16 %v874
        %v887 = vunpack.c.l.b16 %v875
        %v888 = vunpack.c.l.b16 %v876
        %v889 = vpack.c.b16 %v886, %v885
        %v890 = vpack.c.b16 %v888, %v887
        %v894 = vsel %vm413, %v872, 0
        %896 = vmatpush.bf16.msra.mxu0 0
        %897 = vmatpush.bf16.msra.mxu0 0
        %898 = vmatpush.bf16.msra.mxu0 0
        %899 = vmatpush.bf16.msra.mxu0 0
        %900 = vmatpush.bf16.msra.mxu0 0
        %901 = vmatpush.bf16.msra.mxu0 0
        %902 = vmatpush.bf16.msra.mxu0 %v890
        %903 = vmatpush.bf16.msra.mxu0 %v889
        %904 = vmatmul.bf16.gmra.mxu0 %v894
        %v905 = vpop.f32.mrf.mxu0
        %v906 = vadd.f32 %v879, %v905
        %v907 = vpop.f32.mrf.mxu0
        %908 = vdwg.mxu0
        %vm909 = vcmp.gt.f32.partialorder %v906, 0.0
        %v910 = vmul.f32 %v906, 0.01
        %v911 = vsel %vm909, %v906, %v910
        %v912 = vpack.c.bf16 %v911, %v911
        %v913 = vld [vmem:[%s10] sm:$0xf]
        %v914 = vld [vmem:[%s10 + $0x4] sm:$0xf]
        %v915 = vld [vmem:[%s10 + $0x8] sm:$0xf]
        %v916 = vld [vmem:[%s10 + $0xc] sm:$0xf]
        %v917 = vld [vmem:[%s10 + $0x10] sm:$0xf]
        %v918 = vld [vmem:[%s10 + $0x14] sm:$0xf]
        %v919 = vld [vmem:[%s10 + $0x18] sm:$0xf]
        %v920 = vld [vmem:[%s10 + $0x1c] sm:$0xf]
        %v921 = vld [vmem:[%s10 + $0x20] sm:$0xf]
        %v922 = vld [vmem:[%s10 + $0x24] sm:$0xf]
        %v923 = vld [vmem:[%s10 + $0x28] sm:$0xf]
        %v924 = vld [vmem:[%s10 + $0x2c] sm:$0xf]
        %v925 = vld [vmem:[%s10 + $0x30] sm:$0xf]
        %v926 = vld [vmem:[%s10 + $0x34] sm:$0xf]
        %v927 = vld [vmem:[%s10 + $0x38] sm:$0xf]
        %v928 = vld [vmem:[%s10 + $0x3c] sm:$0xf]
        %v929 = vld [vmem:[%s11] sm:$0x1]
        %v931 = vperm.slane %v929, 0
        %v949 = vunpack.c.l.b16 %v913
        %v950 = vunpack.c.l.b16 %v914
        %v951 = vunpack.c.l.b16 %v915
        %v952 = vunpack.c.l.b16 %v916
        %v953 = vunpack.c.l.b16 %v917
        %v954 = vunpack.c.l.b16 %v918
        %v955 = vunpack.c.l.b16 %v919
        %v956 = vunpack.c.l.b16 %v920
        %v957 = vunpack.c.l.b16 %v921
        %v958 = vunpack.c.l.b16 %v922
        %v959 = vunpack.c.l.b16 %v923
        %v960 = vunpack.c.l.b16 %v924
        %v961 = vunpack.c.l.b16 %v925
        %v962 = vunpack.c.l.b16 %v926
        %v963 = vunpack.c.l.b16 %v927
        %v964 = vunpack.c.l.b16 %v928
        %v965 = vpack.c.b16 %v950, %v949
        %v966 = vpack.c.b16 %v952, %v951
        %v967 = vpack.c.b16 %v954, %v953
        %v968 = vpack.c.b16 %v956, %v955
        %v969 = vpack.c.b16 %v958, %v957
        %v970 = vpack.c.b16 %v960, %v959
        %v971 = vpack.c.b16 %v962, %v961
        %v972 = vpack.c.b16 %v964, %v963
        %981 = vmatpush.bf16.msra.mxu0 %v972
        %982 = vmatpush.bf16.msra.mxu0 %v971
        %983 = vmatpush.bf16.msra.mxu0 %v970
        %984 = vmatpush.bf16.msra.mxu0 %v969
        %985 = vmatpush.bf16.msra.mxu0 %v968
        %986 = vmatpush.bf16.msra.mxu0 %v967
        %987 = vmatpush.bf16.msra.mxu0 %v966
        %988 = vmatpush.bf16.msra.mxu0 %v965
        %989 = vmatmul.bf16.gmra.mxu0 %v912
        %v990 = vpop.f32.mrf.mxu0
        %v991 = vadd.f32 %v931, %v990
        %v992 = vpop.f32.mrf.mxu0
        %993 = vdwg.mxu0
        %v994 = vadd.f32 %v839, %v991
        %995 = vst.msk [vmem:[%s404] sm:$0xff] %vm413, %v994
        %s996 = sand.u32 %s291, 1
        %s997 = scalar_lea.sflag [#allocation3], %s996
        %s998 = sand.u32 %s291, 1
        %s999 = smul.addr %s998, 8
        %s1000 = scalar_lea.vmem [#allocation2], %s999
        // Predicated region
        $region69: #{tpu_custom_call.1} parent=67 // pred_check
          %p1001 = pneg %p301
        $region70: #{tpu_custom_call.1} parent=67 // pred_check_branch
          %1003 = sbr.rel (%p1001) target = $region72
        $region71: #{tpu_custom_call.1} parent=67 // pred_region
          %1005 = vsyncadd %s997, 0
          %s1006 = smul.addr %s26, 8
          %s1007 = scalar_lea.hbm %s12, %s1006
          %s1009 = sshll.u32 %s1000, 4
          %s1010 = int_to_ptr.vmem [resolvable:$true] %s1009
          %s1011 = sshll.u32 %s1007, 4
          %s1012 = int_to_ptr.hbm [resolvable:$true] %s1011
          %1014 = dma.vmem_to_hbm [thread:$0]  %s1010, 128, %s1012, %s997
        $region72: #{tpu_custom_call.1} parent=67 // pred_fallthru
          _
      $region68: #{tpu_custom_call.1} parent=5 // pred_fallthru
        _
      %p1015 = scmp.le.s32.totalorder 2, %s21
      // Predicated region
      $region73: #{tpu_custom_call.1} parent=5 // pred_check
        %p1016 = pneg %p1015
      $region74: #{tpu_custom_call.1} parent=5 // pred_check_branch
        %1018 = sbr.rel (%p1016) target = $region76
      $region75: #{tpu_custom_call.1} parent=5 // pred_region
        %s1019 = ssub.s32 %s21, 2
        // Predicated region
        $region77: #{tpu_custom_call.1} parent=75 // pred_check
          %p1020 = pneg %p307
        $region78: #{tpu_custom_call.1} parent=75 // pred_check_branch
          %1022 = sbr.rel (%p1020) target = $region80
        $region79: #{tpu_custom_call.1} parent=75 // pred_region
          %s1023 = sand.u32 %s292, 1
          %s1024 = scalar_lea.sflag [#allocation3], %s1023
          %s1025 = sand.u32 %s292, 1
          %s1026 = smul.addr %s1025, 8
          %s1027 = scalar_lea.vmem [#allocation2], %s1026
          %1029 = dma.done %s1024, 128
        $region80: #{tpu_custom_call.1} parent=75 // pred_fallthru
          _
      $region76: #{tpu_custom_call.1} parent=5 // pred_fallthru
        _
    $region6: #{tpu_custom_call.1} parent=1 // loop_footer
      %s25 = sadd.s32 1, %s21
    $region7: #{tpu_custom_call.1} parent=1 // loop_footer_branch
      %20 = sbr.rel target = $region3
    $region8: #{tpu_custom_call.1} parent=1 // loop_exit
      _
    %1030 = vsyncpa [#allocation3], 1
    %s1031 = scalar_lea.sflag [#allocation3], 1
    %1032 = vsyncpa %s1031, 1

</llo_original>
